<compile_context>
chip_gen: v6e
topology: v6e:2x2x1
jax: 0.10.0
libtpu: 0.0.40
codegen_flags: <defaults>
</compile_context>

<pallas_src>
import math
import functools

import jax
import jax.numpy as jnp
from jax import lax
from jax.experimental import pallas as pl
from jax.experimental.pallas import tpu as pltpu


def _mha_kernel(q_ref, k_ref, v_ref, wqkv_ref, bqkv_ref, wo_ref, bo_ref,
                out_ref, acc_ref, kcache_ref, vcache_ref, *, scale):
    qi = pl.program_id(1)
    h = pl.program_id(2)

    q_in = q_ref[0]          # [tq, D]  bf16
    cdt = q_in.dtype

    # ---- K/V projection for this head: computed once per (batch, head) at
    # the first query tile and cached in VMEM; reused for all later q tiles.
    @pl.when(qi == 0)
    def _():
        k_in = k_ref[0]      # [S, D] bf16
        v_in = v_ref[0]      # [S, D] bf16
        wk = wqkv_ref[1, 0]  # [D, d_k] bf16
        wv = wqkv_ref[2, 0]
        bk = bqkv_ref[1, 0]  # [1, d_k] f32
        bv = bqkv_ref[2, 0]
        kcache_ref[h] = (jnp.dot(k_in, wk, preferred_element_type=jnp.float32)
                         + bk).astype(cdt)
        vcache_ref[h] = (jnp.dot(v_in, wv, preferred_element_type=jnp.float32)
                         + bv).astype(cdt)

    # ---- Q projection (per q-tile, per head); fold the softmax scale here.
    wq = wqkv_ref[0, 0]      # [D, d_k] bf16
    bq = bqkv_ref[0, 0]      # [1, d_k] f32
    q_h = ((jnp.dot(q_in, wq, preferred_element_type=jnp.float32) + bq)
           * scale).astype(cdt)                                         # [tq, d_k]

    k_h = kcache_ref[h]      # [S, d_k] bf16
    v_h = vcache_ref[h]      # [S, d_k] bf16

    # scores = (Q/sqrt(d_k)) K^T : contract last dims, no explicit transpose.
    scores = lax.dot_general(q_h, k_h, (((1,), (1,)), ((), ())),
                             preferred_element_type=jnp.float32)        # [tq, S]

    # Numerically-stable softmax, all in f32; normalizer on the EUP.
    scores = scores - jnp.max(scores, axis=-1, keepdims=True)
    p = jnp.exp(scores)
    p = p * pl.reciprocal(jnp.sum(p, axis=-1, keepdims=True), approx=True)

    ctx = jnp.dot(p.astype(cdt), v_h, preferred_element_type=jnp.float32)  # [tq, d_k]

    # Output projection accumulated per head (no head concat / relayout).
    wo = wo_ref[0]           # [d_k, D] bf16

    @pl.when(h == 0)
    def _():
        acc_ref[...] = jnp.zeros_like(acc_ref)

    acc_ref[...] += jnp.dot(ctx.astype(cdt), wo, preferred_element_type=jnp.float32)

    @pl.when(h == pl.num_programs(2) - 1)
    def _():
        out_ref[0] = (acc_ref[...] + bo_ref[...]).astype(out_ref.dtype)


def multi_headed_attention(query, key, value, params, *, num_heads,
                           q_tile=None, compute_dtype=jnp.bfloat16):
    """query/key/value: [B, S, D].  params hold [D, D] weights in x @ W + b
    layout (i.e. transposed vs torch.nn.Linear.weight) and [D] biases."""
    B, S, D = query.shape
    assert D % num_heads == 0
    d_k = D // num_heads
    if q_tile is None:
        q_tile = min(S, 128)
    assert S % q_tile == 0, "S must be a multiple of the query tile"
    n_q = S // q_tile

    # Host-side head split of the weights (free): the kernel never slices the
    # lane axis.  Stack Q/K/V so per-head weights/biases arrive as one DMA.
    def split_w(w):   # [D, D] -> [H, D, d_k]
        return w.reshape(D, num_heads, d_k).transpose(1, 0, 2)

    def split_b(b):   # [D] -> [H, 1, d_k]
        return b.reshape(num_heads, 1, d_k)

    wqkv = jnp.stack([split_w(params["wq"]), split_w(params["wk"]),
                      split_w(params["wv"])]).astype(compute_dtype)        # [3, H, D, d_k]
    bqkv = jnp.stack([split_b(params["bq"]), split_b(params["bk"]),
                      split_b(params["bv"])]).astype(jnp.float32)          # [3, H, 1, d_k]
    wo = params["wo"].reshape(num_heads, d_k, D).astype(compute_dtype)     # [H, d_k, D]
    bo = params["bo"].reshape(1, D).astype(jnp.float32)                    # [1, D]

    q = query.astype(compute_dtype)
    k = key.astype(compute_dtype)
    v = value.astype(compute_dtype)

    kernel = functools.partial(_mha_kernel, scale=1.0 / math.sqrt(d_k))

    q_spec = pl.BlockSpec((1, q_tile, D), lambda b, qi, h: (b, qi, 0))
    kv_spec = pl.BlockSpec((1, S, D), lambda b, qi, h: (b, 0, 0))
    wqkv_spec = pl.BlockSpec((3, 1, D, d_k), lambda b, qi, h: (0, h, 0, 0))
    bqkv_spec = pl.BlockSpec((3, 1, 1, d_k), lambda b, qi, h: (0, h, 0, 0))
    wo_spec = pl.BlockSpec((1, d_k, D), lambda b, qi, h: (h, 0, 0))
    bo_spec = pl.BlockSpec((1, D), lambda b, qi, h: (0, 0))
    out_spec = pl.BlockSpec((1, q_tile, D), lambda b, qi, h: (b, qi, 0))

    out = pl.pallas_call(
        kernel,
        out_shape=jax.ShapeDtypeStruct((B, S, D), jnp.float32),
        grid_spec=pltpu.PrefetchScalarGridSpec(
            num_scalar_prefetch=0,
            grid=(B, n_q, num_heads),
            in_specs=[q_spec, kv_spec, kv_spec,
                      wqkv_spec, bqkv_spec, wo_spec, bo_spec],
            out_specs=out_spec,
            scratch_shapes=[
                pltpu.VMEM((q_tile, D), jnp.float32),          # output accumulator
                pltpu.VMEM((num_heads, S, d_k), compute_dtype),  # K_h cache
                pltpu.VMEM((num_heads, S, d_k), compute_dtype),  # V_h cache
            ],
        ),
        compiler_params=pltpu.CompilerParams(
            # Only the batch axis is megacore-split: the q-tile axis must run
            # qi==0 before later tiles on the same core (K/V cache fill).
            dimension_semantics=("parallel", "arbitrary", "arbitrary"),
            vmem_limit_bytes=32 * 1024 * 1024,
        ),
    )(q, k, v, wqkv, bqkv, wo, bo)
    return out


def _reference(query, key, value, params, *, num_heads, compute_dtype=jnp.bfloat16):
    """Pure-JAX reference matching the PyTorch forward (mask/group_prob None,
    eval mode), mirroring the kernel's bf16-operand / f32-accumulate casts."""
    B, S, D = query.shape
    d_k = D // num_heads
    f32 = jnp.float32

    def proj(x, w, b):
        y = jnp.dot(x.astype(compute_dtype), w.astype(compute_dtype),
                    preferred_element_type=f32) + b
        return y.reshape(B, S, num_heads, d_k).transpose(0, 2, 1, 3)   # [B, H, S, d_k]

    q = proj(query, params["wq"], params["bq"])
    k = proj(key, params["wk"], params["bk"])
    v = proj(value, params["wv"], params["bv"])

    scores = jnp.einsum("bhqd,bhkd->bhqk",
                        q.astype(compute_dtype), k.astype(compute_dtype),
                        preferred_element_type=f32) / math.sqrt(d_k)
    p = jax.nn.softmax(scores, axis=-1)
    x = jnp.einsum("bhqk,bhkd->bhqd",
                   p.astype(compute_dtype), v.astype(compute_dtype),
                   preferred_element_type=f32)
    x = x.transpose(0, 2, 1, 3).reshape(B, S, D)
    return jnp.dot(x.astype(compute_dtype), params["wo"].astype(compute_dtype),
                   preferred_element_type=f32) + params["bo"]


if __name__ == "__main__":
    B, S, D, H = 2, 16, 128, 4          # d_k = 32; q_tile = 8 -> 2 query tiles

    key0 = jax.random.PRNGKey(0)
    keys = jax.random.split(key0, 12)

    def init_linear(kw, kb, fan_in):
        bound = 1.0 / math.sqrt(fan_in)
        w = jax.random.uniform(kw, (fan_in, fan_in), jnp.float32, -bound, bound)
        b = jax.random.uniform(kb, (fan_in,), jnp.float32, -bound, bound)
        return w, b

    wq, bq = init_linear(keys[0], keys[1], D)
    wk, bk = init_linear(keys[2], keys[3], D)
    wv, bv = init_linear(keys[4], keys[5], D)
    wo, bo = init_linear(keys[6], keys[7], D)
    params = dict(wq=wq, bq=bq, wk=wk, bk=bk, wv=wv, bv=bv, wo=wo, bo=bo)

    query = jax.random.normal(keys[8], (B, S, D), jnp.float32)
    key_in = jax.random.normal(keys[9], (B, S, D), jnp.float32)
    value = jax.random.normal(keys[10], (B, S, D), jnp.float32)

    out = multi_headed_attention(query, key_in, value, params, num_heads=H, q_tile=8)
    out = jax.block_until_ready(out)

    ref = _reference(query, key_in, value, params, num_heads=H)
    assert out.shape == (B, S, D)
    max_err = float(jnp.max(jnp.abs(out - ref)))
    assert jnp.allclose(out, ref, atol=3e-2, rtol=3e-2), (
        f"mismatch vs JAX reference (max abs err {max_err})")

    print("KERNEL_OK")
</pallas_src>

<mosaic_0001>
module attributes {stable_mosaic.version = 11 : i64} {
  func.func @_mha_kernel(%arg0: i32, %arg1: i32, %arg2: i32, %arg3: memref<1x8x128xbf16, #tpu.memory_space<vmem>>, %arg4: memref<1x16x128xbf16, #tpu.memory_space<vmem>>, %arg5: memref<1x16x128xbf16, #tpu.memory_space<vmem>>, %arg6: memref<3x1x128x32xbf16, #tpu.memory_space<vmem>>, %arg7: memref<3x1x1x32xf32, #tpu.memory_space<vmem>>, %arg8: memref<1x32x128xbf16, #tpu.memory_space<vmem>>, %arg9: memref<1x128xf32, #tpu.memory_space<vmem>>, %arg10: memref<1x8x128xf32, #tpu.memory_space<vmem>>, %arg11: memref<8x128xf32, #tpu.memory_space<vmem>>, %arg12: memref<4x16x32xbf16, #tpu.memory_space<vmem>>, %arg13: memref<4x16x32xbf16, #tpu.memory_space<vmem>>) attributes {dimension_semantics = [#tpu.dimension_semantics<parallel>, #tpu.dimension_semantics<arbitrary>, #tpu.dimension_semantics<arbitrary>], iteration_bounds = array<i64: 2, 2, 4>, scalar_prefetch = 0 : i64, scratch_operands = 3 : i64, tpu.core_type = #tpu.core_type<tc>, window_params = [{transform_indices = @transform_0, window_bounds = array<i64: 1, 8, 128>}, {transform_indices = @transform_1, window_bounds = array<i64: 1, 16, 128>}, {transform_indices = @transform_2, window_bounds = array<i64: 1, 16, 128>}, {transform_indices = @transform_3, window_bounds = array<i64: 3, 1, 128, 32>}, {transform_indices = @transform_4, window_bounds = array<i64: 3, 1, 1, 32>}, {transform_indices = @transform_5, window_bounds = array<i64: 1, 32, 128>}, {pipeline_mode = #tpu.pipeline_mode<synchronous>, transform_indices = @transform_6, window_bounds = array<i64: 1, 128>}, {transform_indices = @transform_7, window_bounds = array<i64: 1, 8, 128>}]} {
    %c0 = arith.constant 0 : index
    %c0_0 = arith.constant 0 : index
    %c0_1 = arith.constant 0 : index
    %0 = vector.load %arg3[%c0, %c0_0, %c0_1] : memref<1x8x128xbf16, #tpu.memory_space<vmem>>, vector<1x8x128xbf16>
    %1 = vector.shape_cast %0 : vector<1x8x128xbf16> to vector<8x128xbf16>
    %c0_i32 = arith.constant 0 : i32
    %2 = arith.cmpi eq, %arg1, %c0_i32 : i32
    %3 = arith.extui %2 : i1 to i32
    %c0_i32_2 = arith.constant 0 : i32
    %4 = arith.cmpi ne, %3, %c0_i32_2 : i32
    scf.if %4 {
      %c0_31 = arith.constant 0 : index
      %c0_32 = arith.constant 0 : index
      %c0_33 = arith.constant 0 : index
      %47 = vector.load %arg4[%c0_31, %c0_32, %c0_33] : memref<1x16x128xbf16, #tpu.memory_space<vmem>>, vector<1x16x128xbf16>
      %48 = vector.shape_cast %47 : vector<1x16x128xbf16> to vector<16x128xbf16>
      %c0_34 = arith.constant 0 : index
      %c0_35 = arith.constant 0 : index
      %c0_36 = arith.constant 0 : index
      %49 = vector.load %arg5[%c0_34, %c0_35, %c0_36] : memref<1x16x128xbf16, #tpu.memory_space<vmem>>, vector<1x16x128xbf16>
      %50 = vector.shape_cast %49 : vector<1x16x128xbf16> to vector<16x128xbf16>
      %c1 = arith.constant 1 : index
      %c0_37 = arith.constant 0 : index
      %c0_38 = arith.constant 0 : index
      %c0_39 = arith.constant 0 : index
      %51 = vector.load %arg6[%c1, %c0_37, %c0_38, %c0_39] : memref<3x1x128x32xbf16, #tpu.memory_space<vmem>>, vector<1x1x128x32xbf16>
      %52 = vector.shape_cast %51 : vector<1x1x128x32xbf16> to vector<128x32xbf16>
      %c2 = arith.constant 2 : index
      %c0_40 = arith.constant 0 : index
      %c0_41 = arith.constant 0 : index
      %c0_42 = arith.constant 0 : index
      %53 = vector.load %arg6[%c2, %c0_40, %c0_41, %c0_42] : memref<3x1x128x32xbf16, #tpu.memory_space<vmem>>, vector<1x1x128x32xbf16>
      %54 = vector.shape_cast %53 : vector<1x1x128x32xbf16> to vector<128x32xbf16>
      %c1_43 = arith.constant 1 : index
      %c0_44 = arith.constant 0 : index
      %c0_45 = arith.constant 0 : index
      %c0_46 = arith.constant 0 : index
      %55 = vector.load %arg7[%c1_43, %c0_44, %c0_45, %c0_46] : memref<3x1x1x32xf32, #tpu.memory_space<vmem>>, vector<1x1x1x32xf32>
      %56 = vector.shape_cast %55 : vector<1x1x1x32xf32> to vector<1x32xf32>
      %c2_47 = arith.constant 2 : index
      %c0_48 = arith.constant 0 : index
      %c0_49 = arith.constant 0 : index
      %c0_50 = arith.constant 0 : index
      %57 = vector.load %arg7[%c2_47, %c0_48, %c0_49, %c0_50] : memref<3x1x1x32xf32, #tpu.memory_space<vmem>>, vector<1x1x1x32xf32>
      %58 = vector.shape_cast %57 : vector<1x1x1x32xf32> to vector<1x32xf32>
      %cst_51 = arith.constant dense<0.000000e+00> : vector<16x32xf32>
      %59 = tpu.matmul %48, %52, %cst_51 {dimension_numbers = #tpu.dot_dimension_numbers<[1], [0], [0], [1], [0, 0, 1, 1], [], []>} : vector<16x128xbf16>, vector<128x32xbf16>, vector<16x32xf32> -> vector<16x32xf32>
      %60 = vector.broadcast %56 : vector<1x32xf32> to vector<16x32xf32>
      %61 = arith.addf %59, %60 : vector<16x32xf32>
      %62 = arith.truncf %61 : vector<16x32xf32> to vector<16x32xbf16>
      %63 = arith.index_cast %arg2 : i32 to index
      %c0_52 = arith.constant 0 : index
      %c0_53 = arith.constant 0 : index
      %64 = vector.load %arg12[%63, %c0_52, %c0_53] : memref<4x16x32xbf16, #tpu.memory_space<vmem>>, vector<1x16x32xbf16>
      %65 = vector.shape_cast %64 : vector<1x16x32xbf16> to vector<16x32xbf16>
      %66 = vector.shape_cast %62 : vector<16x32xbf16> to vector<1x16x32xbf16>
      tpu.vector_store %arg12[%63, %c0_52, %c0_53], %66 {strides = array<i32>} : memref<4x16x32xbf16, #tpu.memory_space<vmem>>, vector<1x16x32xbf16>,
      %cst_54 = arith.constant dense<0.000000e+00> : vector<16x32xf32>
      %67 = tpu.matmul %50, %54, %cst_54 {dimension_numbers = #tpu.dot_dimension_numbers<[1], [0], [0], [1], [0, 0, 1, 1], [], []>} : vector<16x128xbf16>, vector<128x32xbf16>, vector<16x32xf32> -> vector<16x32xf32>
      %68 = vector.broadcast %58 : vector<1x32xf32> to vector<16x32xf32>
      %69 = arith.addf %67, %68 : vector<16x32xf32>
      %70 = arith.truncf %69 : vector<16x32xf32> to vector<16x32xbf16>
      %71 = arith.index_cast %arg2 : i32 to index
      %c0_55 = arith.constant 0 : index
      %c0_56 = arith.constant 0 : index
      %72 = vector.load %arg13[%71, %c0_55, %c0_56] : memref<4x16x32xbf16, #tpu.memory_space<vmem>>, vector<1x16x32xbf16>
      %73 = vector.shape_cast %72 : vector<1x16x32xbf16> to vector<16x32xbf16>
      %74 = vector.shape_cast %70 : vector<16x32xbf16> to vector<1x16x32xbf16>
      tpu.vector_store %arg13[%71, %c0_55, %c0_56], %74 {strides = array<i32>} : memref<4x16x32xbf16, #tpu.memory_space<vmem>>, vector<1x16x32xbf16>,
    } else {
    }
    %c0_3 = arith.constant 0 : index
    %c0_4 = arith.constant 0 : index
    %c0_5 = arith.constant 0 : index
    %c0_6 = arith.constant 0 : index
    %5 = vector.load %arg6[%c0_3, %c0_4, %c0_5, %c0_6] : memref<3x1x128x32xbf16, #tpu.memory_space<vmem>>, vector<1x1x128x32xbf16>
    %6 = vector.shape_cast %5 : vector<1x1x128x32xbf16> to vector<128x32xbf16>
    %c0_7 = arith.constant 0 : index
    %c0_8 = arith.constant 0 : index
    %c0_9 = arith.constant 0 : index
    %c0_10 = arith.constant 0 : index
    %7 = vector.load %arg7[%c0_7, %c0_8, %c0_9, %c0_10] : memref<3x1x1x32xf32, #tpu.memory_space<vmem>>, vector<1x1x1x32xf32>
    %8 = vector.shape_cast %7 : vector<1x1x1x32xf32> to vector<1x32xf32>
    %cst = arith.constant dense<0.000000e+00> : vector<8x32xf32>
    %9 = tpu.matmul %1, %6, %cst {dimension_numbers = #tpu.dot_dimension_numbers<[1], [0], [0], [1], [0, 0, 1, 1], [], []>} : vector<8x128xbf16>, vector<128x32xbf16>, vector<8x32xf32> -> vector<8x32xf32>
    %10 = vector.broadcast %8 : vector<1x32xf32> to vector<8x32xf32>
    %11 = arith.addf %9, %10 : vector<8x32xf32>
    %cst_11 = arith.constant 0.176776692 : f32
    %12 = vector.broadcast %cst_11 : f32 to vector<8x32xf32>
    %13 = arith.mulf %11, %12 : vector<8x32xf32>
    %14 = arith.truncf %13 : vector<8x32xf32> to vector<8x32xbf16>
    %15 = arith.index_cast %arg2 : i32 to index
    %c0_12 = arith.constant 0 : index
    %c0_13 = arith.constant 0 : index
    %16 = vector.load %arg12[%15, %c0_12, %c0_13] : memref<4x16x32xbf16, #tpu.memory_space<vmem>>, vector<1x16x32xbf16>
    %17 = vector.shape_cast %16 : vector<1x16x32xbf16> to vector<16x32xbf16>
    %18 = arith.index_cast %arg2 : i32 to index
    %c0_14 = arith.constant 0 : index
    %c0_15 = arith.constant 0 : index
    %19 = vector.load %arg13[%18, %c0_14, %c0_15] : memref<4x16x32xbf16, #tpu.memory_space<vmem>>, vector<1x16x32xbf16>
    %20 = vector.shape_cast %19 : vector<1x16x32xbf16> to vector<16x32xbf16>
    %cst_16 = arith.constant dense<0.000000e+00> : vector<8x16xf32>
    %21 = tpu.matmul %14, %17, %cst_16 {dimension_numbers = #tpu.dot_dimension_numbers<[1], [1], [0], [0], [0, 0, 1, 0], [], []>} : vector<8x32xbf16>, vector<16x32xbf16>, vector<8x16xf32> -> vector<8x16xf32>
    %cst_17 = arith.constant dense<0xFF800000> : vector<8xf32>
    %22 = vector.multi_reduction <maximumf>, %21, %cst_17 [1] : vector<8x16xf32> to vector<8xf32>
    %23 = vector.shape_cast %22 : vector<8xf32> to vector<8x1xf32>
    %24 = vector.broadcast %23 : vector<8x1xf32> to vector<8x16xf32>
    %25 = arith.subf %21, %24 : vector<8x16xf32>
    %26 = math.exp %25 : vector<8x16xf32>
    %cst_18 = arith.constant dense<0.000000e+00> : vector<8xf32>
    %27 = vector.multi_reduction <add>, %26, %cst_18 [1] : vector<8x16xf32> to vector<8xf32>
    %28 = vector.shape_cast %27 : vector<8xf32> to vector<8x1xf32>
    %29 = tpu.reciprocal %28 {approx = true} : vector<8x1xf32> -> vector<8x1xf32>
    %30 = vector.broadcast %29 : vector<8x1xf32> to vector<8x16xf32>
    %31 = arith.mulf %26, %30 : vector<8x16xf32>
    %32 = arith.truncf %31 : vector<8x16xf32> to vector<8x16xbf16>
    %cst_19 = arith.constant dense<0.000000e+00> : vector<8x32xf32>
    %33 = tpu.matmul %32, %20, %cst_19 {dimension_numbers = #tpu.dot_dimension_numbers<[1], [0], [0], [1], [0, 0, 1, 1], [], []>} : vector<8x16xbf16>, vector<16x32xbf16>, vector<8x32xf32> -> vector<8x32xf32>
    %c0_20 = arith.constant 0 : index
    %c0_21 = arith.constant 0 : index
    %c0_22 = arith.constant 0 : index
    %34 = vector.load %arg8[%c0_20, %c0_21, %c0_22] : memref<1x32x128xbf16, #tpu.memory_space<vmem>>, vector<1x32x128xbf16>
    %35 = vector.shape_cast %34 : vector<1x32x128xbf16> to vector<32x128xbf16>
    %c0_i32_23 = arith.constant 0 : i32
    %36 = arith.cmpi eq, %arg2, %c0_i32_23 : i32
    %37 = arith.extui %36 : i1 to i32
    %c0_i32_24 = arith.constant 0 : i32
    %38 = arith.cmpi ne, %37, %c0_i32_24 : i32
    scf.if %38 {
      %cst_31 = arith.constant 0.000000e+00 : f32
      %47 = vector.broadcast %cst_31 : f32 to vector<8x128xf32>
      %c0_32 = arith.constant 0 : index
      %c0_33 = arith.constant 0 : index
      %48 = vector.load %arg11[%c0_32, %c0_33] : memref<8x128xf32, #tpu.memory_space<vmem>>, vector<8x128xf32>
      tpu.vector_store %arg11[%c0_32, %c0_33], %47 {strides = array<i32>} : memref<8x128xf32, #tpu.memory_space<vmem>>, vector<8x128xf32>,
    } else {
    }
    %c0_25 = arith.constant 0 : index
    %c0_26 = arith.constant 0 : index
    %39 = vector.load %arg11[%c0_25, %c0_26] : memref<8x128xf32, #tpu.memory_space<vmem>>, vector<8x128xf32>
    %40 = arith.truncf %33 : vector<8x32xf32> to vector<8x32xbf16>
    %cst_27 = arith.constant dense<0.000000e+00> : vector<8x128xf32>
    %41 = tpu.matmul %40, %35, %cst_27 {dimension_numbers = #tpu.dot_dimension_numbers<[1], [0], [0], [1], [0, 0, 1, 1], [], []>} : vector<8x32xbf16>, vector<32x128xbf16>, vector<8x128xf32> -> vector<8x128xf32>
    %42 = arith.addf %39, %41 : vector<8x128xf32>
    %c0_28 = arith.constant 0 : index
    %c0_29 = arith.constant 0 : index
    %43 = vector.load %arg11[%c0_28, %c0_29] : memref<8x128xf32, #tpu.memory_space<vmem>>, vector<8x128xf32>
    tpu.vector_store %arg11[%c0_28, %c0_29], %42 {strides = array<i32>} : memref<8x128xf32, #tpu.memory_space<vmem>>, vector<8x128xf32>,
    %c3_i32 = arith.constant 3 : i32
    %44 = arith.cmpi eq, %arg2, %c3_i32 : i32
    %45 = arith.extui %44 : i1 to i32
    %c0_i32_30 = arith.constant 0 : i32
    %46 = arith.cmpi ne, %45, %c0_i32_30 : i32
    scf.if %46 {
      %c0_31 = arith.constant 0 : index
      %c0_32 = arith.constant 0 : index
      %47 = vector.load %arg11[%c0_31, %c0_32] : memref<8x128xf32, #tpu.memory_space<vmem>>, vector<8x128xf32>
      %c0_33 = arith.constant 0 : index
      %c0_34 = arith.constant 0 : index
      %48 = vector.load %arg9[%c0_33, %c0_34] : memref<1x128xf32, #tpu.memory_space<vmem>>, vector<1x128xf32>
      %49 = vector.broadcast %48 : vector<1x128xf32> to vector<8x128xf32>
      %50 = arith.addf %47, %49 : vector<8x128xf32>
      %c0_35 = arith.constant 0 : index
      %c0_36 = arith.constant 0 : index
      %c0_37 = arith.constant 0 : index
      %51 = vector.load %arg10[%c0_35, %c0_36, %c0_37] : memref<1x8x128xf32, #tpu.memory_space<vmem>>, vector<1x8x128xf32>
      %52 = vector.shape_cast %51 : vector<1x8x128xf32> to vector<8x128xf32>
      %53 = vector.shape_cast %50 : vector<8x128xf32> to vector<1x8x128xf32>
      tpu.vector_store %arg10[%c0_35, %c0_36, %c0_37], %53 {strides = array<i32>} : memref<1x8x128xf32, #tpu.memory_space<vmem>>, vector<1x8x128xf32>,
    } else {
    }
    return
  }
  func.func @transform_0(%arg0: i32, %arg1: i32, %arg2: i32) -> (i32, i32, i32) {
    %c0_i32 = arith.constant 0 : i32
    %c0_i32_0 = arith.constant 0 : i32
    return %arg0, %arg1, %c0_i32 : i32, i32, i32
  }
  func.func @transform_1(%arg0: i32, %arg1: i32, %arg2: i32) -> (i32, i32, i32) {
    %c0_i32 = arith.constant 0 : i32
    %c0_i32_0 = arith.constant 0 : i32
    %c0_i32_1 = arith.constant 0 : i32
    return %arg0, %c0_i32, %c0_i32_0 : i32, i32, i32
  }
  func.func @transform_2(%arg0: i32, %arg1: i32, %arg2: i32) -> (i32, i32, i32) {
    %c0_i32 = arith.constant 0 : i32
    %c0_i32_0 = arith.constant 0 : i32
    %c0_i32_1 = arith.constant 0 : i32
    return %arg0, %c0_i32, %c0_i32_0 : i32, i32, i32
  }
  func.func @transform_3(%arg0: i32, %arg1: i32, %arg2: i32) -> (i32, i32, i32, i32) {
    %c0_i32 = arith.constant 0 : i32
    %c0_i32_0 = arith.constant 0 : i32
    %c0_i32_1 = arith.constant 0 : i32
    %c0_i32_2 = arith.constant 0 : i32
    return %c0_i32, %arg2, %c0_i32_0, %c0_i32_1 : i32, i32, i32, i32
  }
  func.func @transform_4(%arg0: i32, %arg1: i32, %arg2: i32) -> (i32, i32, i32, i32) {
    %c0_i32 = arith.constant 0 : i32
    %c0_i32_0 = arith.constant 0 : i32
    %c0_i32_1 = arith.constant 0 : i32
    %c0_i32_2 = arith.constant 0 : i32
    return %c0_i32, %arg2, %c0_i32_0, %c0_i32_1 : i32, i32, i32, i32
  }
  func.func @transform_5(%arg0: i32, %arg1: i32, %arg2: i32) -> (i32, i32, i32) {
    %c0_i32 = arith.constant 0 : i32
    %c0_i32_0 = arith.constant 0 : i32
    %c0_i32_1 = arith.constant 0 : i32
    return %arg2, %c0_i32, %c0_i32_0 : i32, i32, i32
  }
  func.func @transform_6(%arg0: i32, %arg1: i32, %arg2: i32) -> (i32, i32) {
    %c0_i32 = arith.constant 0 : i32
    %c0_i32_0 = arith.constant 0 : i32
    %c0_i32_1 = arith.constant 0 : i32
    return %c0_i32, %c0_i32_0 : i32, i32
  }
  func.func @transform_7(%arg0: i32, %arg1: i32, %arg2: i32) -> (i32, i32, i32) {
    %c0_i32 = arith.constant 0 : i32
    %c0_i32_0 = arith.constant 0 : i32
    return %arg0, %arg1, %c0_i32 : i32, i32, i32
  }
}

</mosaic_0001>

<llo_original>
// kernel: tpu_custom_call.1
$region0: #{tpu_custom_call.1}
  #allocation0 [shape = 'u32[]', space=smem, size = 0x4, offset = 0x4, fixed_abs, tag = 'smem constant byte address 0x4 - core index']
  #allocation1 [shape = 'u32[144,128]{1,0:T(1,128)}', space=vmem, size = 0x12000, scoped, tag = 'internal scratch']
  #allocation2 [shape = 'f32[8,128]{1,0:T(8,128)}', space=vmem, size = 0x1000, scoped, tag = 'scratch operand']
  #allocation3 [shape = 'bf16[4,16,32]{2,1,0:T(8,128)(2,1)}', space=vmem, size = 0x4000, scoped, tag = 'scratch operand']
  #allocation4 [shape = 'bf16[4,16,32]{2,1,0:T(8,128)(2,1)}', space=vmem, size = 0x4000, scoped, tag = 'scratch operand']
  %s0 = inlined_call_operand.vmem [shape: bf16[2,16,128], index: 0, kind: input, shape index: {}]
  %s1 = inlined_call_operand.vmem [shape: bf16[2,16,128], index: 1, kind: input, shape index: {}]
  %s2 = inlined_call_operand.vmem [shape: bf16[2,16,128], index: 2, kind: input, shape index: {}]
  %s3 = inlined_call_operand.vmem [shape: bf16[3,4,128,32], index: 3, kind: input, shape index: {}]
  %s4 = inlined_call_operand.vmem [shape: f32[3,4,1,32], index: 4, kind: input, shape index: {}]
  %s5 = inlined_call_operand.vmem [shape: bf16[4,32,128], index: 5, kind: input, shape index: {}]
  %s6 = inlined_call_operand.vmem [shape: f32[1,128], index: 6, kind: input, shape index: {}]
  %s7 = inlined_call_operand.hbm [shape: f32[2,16,128], index: 7, kind: output, shape index: {}]
  %s8 = sld [smem:[#allocation0]]
  $region148: #{tpu_custom_call.1} parent=0
    _
  %s10 = ssub.s32 1, %s8
  %s11 = scalar_select 0, %s10, %s8
  $region1: #{tpu_custom_call.1} parent=0
    #allocation5 [shape = 'u8[196608]{0}', space=vmem, size = 0x30000, scoped, tag = 'input window, operand 3']
    #allocation6 [shape = 'u8[3072]{0}', space=vmem, size = 0xc00, scoped, tag = 'input window, operand 4']
    #allocation7 [shape = 'u8[8192]{0}', space=vmem, size = 0x2000, scoped, tag = 'output window, operand 0']
    #allocation8 [shape = 's32[2]{0}', space=sflag, size = 0x8, scoped, tag = 'scoped memory for tpu_custom_call.1']
    %12 = vsyncpa [#allocation8], 0
    %s13 = scalar_lea.sflag [#allocation8], 1
    %14 = vsyncpa %s13, 0
    loop: start=0, step=1, limit=18
    $region2: #{tpu_custom_call.1} parent=1 // loop_pre_header
      _
    $region3: #{tpu_custom_call.1} parent=1 // loop_header
      %s16 = sphi 0, %s20
      %p17 = scmp.ge.s32.totalorder %s16, 18
      %s23 = sphi 0, %s42
      %s24 = sphi 0, %s38
      %s25 = sphi 0, %s34
      %s26 = sphi 0, %s23
      %s27 = sphi 0, %s24
      %s28 = sphi 0, %s25
      %s29 = sphi 0, %s26
      %s30 = sphi 0, %s27
      %s31 = sphi 0, %s28
      %s47 = sphi 0, %s49
      %s50 = sphi 0, %s47
      %s51 = sphi 0, %s50
      %s67 = sphi 0, %s51
      %s73 = sphi 0, %s75
      %s76 = sphi 0, %s73
      %s77 = sphi 0, %s76
      %s93 = sphi 0, %s77
      %s99 = sphi 0, %s101
      %s102 = sphi 0, %s99
      %s103 = sphi 0, %s102
      %s119 = sphi 0, %s103
      %s125 = sphi 0, %s127
      %s128 = sphi 0, %s125
      %s129 = sphi 0, %s128
      %s145 = sphi 0, %s129
      %s151 = sphi 0, %s153
      %s154 = sphi 0, %s151
      %s155 = sphi 0, %s154
      %s171 = sphi 0, %s155
      %s177 = sphi 0, %s179
      %s180 = sphi 0, %s177
      %s181 = sphi 0, %s180
      %s197 = sphi 0, %s181
      %s201 = sphi 0, %s201
      %s203 = sphi 0, %s201
      %s204 = sphi 0, %s203
      %s218 = sphi 0, %s204
      %s226 = sphi 0, %s228
      %s229 = sphi 0, %s226
      %s230 = sphi 0, %s229
      %s246 = sphi 0, %s230
    $region4: #{tpu_custom_call.1} parent=1 // loop_header_branch
      %19 = sbr.rel (%p17) target = $region8
    $region5: #{tpu_custom_call.1} parent=1 // loop_body
      %s21 = ssub.s32 %s16, 1
      %s22 = ssub.s32 %s16, 2
      %s32 = sadd.s32 1, %s25
      %p33 = scmp.ge.s32.totalorder %s32, 4
      %s34 = scalar_select %p33, 0, %s32
      %s35 = sadd.s32 1, %s24
      %s36 = scalar_select %p33, %s35, %s24
      %p37 = scmp.ge.s32.totalorder %s36, 2
      %s38 = scalar_select %p37, 0, %s36
      %s39 = sadd.s32 1, %s23
      %s40 = scalar_select %p37, %s39, %s23
      %p41 = scmp.ge.s32.totalorder %s40, 2
      %s42 = scalar_select %p41, 0, %s40
      %s43 = ssub.s32 %s23, %s42
      %s44 = ssub.s32 %s24, %s38
      %s45 = sor.u32 %s43, %s44
      %p46 = scmp.eq.s32.totalorder %s45, 0
      %s48 = sadd.s32 %s47, 1
      %s49 = scalar_select %p46, %s47, %s48
      %p52 = pneg %p46
      %p53 = scmp.eq.s32.totalorder %s16, 15
      %p54 = por %p52, %p53
      %p55 = scmp.ne.s32.totalorder %s47, %s50
      %p56 = scmp.eq.s32.totalorder %s16, 0
      %p57 = por %p55, %p56
      %p58 = scmp.ne.s32.totalorder %s47, %s50
      %p59 = scmp.eq.s32.totalorder %s21, 15
      %p60 = por %p58, %p59
      %p61 = scmp.ne.s32.totalorder %s50, %s51
      %p62 = scmp.eq.s32.totalorder %s21, 0
      %p63 = por %p61, %p62
      %p64 = scmp.ne.s32.totalorder %s50, %s51
      %p65 = scmp.eq.s32.totalorder %s22, 15
      %p66 = por %p64, %p65
      %p68 = scmp.ne.s32.totalorder %s51, %s67
      %p69 = scmp.eq.s32.totalorder %s22, 0
      %p70 = por %p68, %p69
      %s71 = ssub.s32 %s23, %s42
      %p72 = scmp.eq.s32.totalorder %s71, 0
      %s74 = sadd.s32 %s73, 1
      %s75 = scalar_select %p72, %s73, %s74
      %p78 = pneg %p72
      %p79 = scmp.eq.s32.totalorder %s16, 15
      %p80 = por %p78, %p79
      %p81 = scmp.ne.s32.totalorder %s73, %s76
      %p82 = scmp.eq.s32.totalorder %s16, 0
      %p83 = por %p81, %p82
      %p84 = scmp.ne.s32.totalorder %s73, %s76
      %p85 = scmp.eq.s32.totalorder %s21, 15
      %p86 = por %p84, %p85
      %p87 = scmp.ne.s32.totalorder %s76, %s77
      %p88 = scmp.eq.s32.totalorder %s21, 0
      %p89 = por %p87, %p88
      %p90 = scmp.ne.s32.totalorder %s76, %s77
      %p91 = scmp.eq.s32.totalorder %s22, 15
      %p92 = por %p90, %p91
      %p94 = scmp.ne.s32.totalorder %s77, %s93
      %p95 = scmp.eq.s32.totalorder %s22, 0
      %p96 = por %p94, %p95
      %s97 = ssub.s32 %s23, %s42
      %p98 = scmp.eq.s32.totalorder %s97, 0
      %s100 = sadd.s32 %s99, 1
      %s101 = scalar_select %p98, %s99, %s100
      %p104 = pneg %p98
      %p105 = scmp.eq.s32.totalorder %s16, 15
      %p106 = por %p104, %p105
      %p107 = scmp.ne.s32.totalorder %s99, %s102
      %p108 = scmp.eq.s32.totalorder %s16, 0
      %p109 = por %p107, %p108
      %p110 = scmp.ne.s32.totalorder %s99, %s102
      %p111 = scmp.eq.s32.totalorder %s21, 15
      %p112 = por %p110, %p111
      %p113 = scmp.ne.s32.totalorder %s102, %s103
      %p114 = scmp.eq.s32.totalorder %s21, 0
      %p115 = por %p113, %p114
      %p116 = scmp.ne.s32.totalorder %s102, %s103
      %p117 = scmp.eq.s32.totalorder %s22, 15
      %p118 = por %p116, %p117
      %p120 = scmp.ne.s32.totalorder %s103, %s119
      %p121 = scmp.eq.s32.totalorder %s22, 0
      %p122 = por %p120, %p121
      %s123 = ssub.s32 %s25, %s34
      %p124 = scmp.eq.s32.totalorder %s123, 0
      %s126 = sadd.s32 %s125, 1
      %s127 = scalar_select %p124, %s125, %s126
      %p130 = pneg %p124
      %p131 = scmp.eq.s32.totalorder %s16, 15
      %p132 = por %p130, %p131
      %p133 = scmp.ne.s32.totalorder %s125, %s128
      %p134 = scmp.eq.s32.totalorder %s16, 0
      %p135 = por %p133, %p134
      %p136 = scmp.ne.s32.totalorder %s125, %s128
      %p137 = scmp.eq.s32.totalorder %s21, 15
      %p138 = por %p136, %p137
      %p139 = scmp.ne.s32.totalorder %s128, %s129
      %p140 = scmp.eq.s32.totalorder %s21, 0
      %p141 = por %p139, %p140
      %p142 = scmp.ne.s32.totalorder %s128, %s129
      %p143 = scmp.eq.s32.totalorder %s22, 15
      %p144 = por %p142, %p143
      %p146 = scmp.ne.s32.totalorder %s129, %s145
      %p147 = scmp.eq.s32.totalorder %s22, 0
      %p148 = por %p146, %p147
      %s149 = ssub.s32 %s25, %s34
      %p150 = scmp.eq.s32.totalorder %s149, 0
      %s152 = sadd.s32 %s151, 1
      %s153 = scalar_select %p150, %s151, %s152
      %p156 = pneg %p150
      %p157 = scmp.eq.s32.totalorder %s16, 15
      %p158 = por %p156, %p157
      %p159 = scmp.ne.s32.totalorder %s151, %s154
      %p160 = scmp.eq.s32.totalorder %s16, 0
      %p161 = por %p159, %p160
      %p162 = scmp.ne.s32.totalorder %s151, %s154
      %p163 = scmp.eq.s32.totalorder %s21, 15
      %p164 = por %p162, %p163
      %p165 = scmp.ne.s32.totalorder %s154, %s155
      %p166 = scmp.eq.s32.totalorder %s21, 0
      %p167 = por %p165, %p166
      %p168 = scmp.ne.s32.totalorder %s154, %s155
      %p169 = scmp.eq.s32.totalorder %s22, 15
      %p170 = por %p168, %p169
      %p172 = scmp.ne.s32.totalorder %s155, %s171
      %p173 = scmp.eq.s32.totalorder %s22, 0
      %p174 = por %p172, %p173
      %s175 = ssub.s32 %s25, %s34
      %p176 = scmp.eq.s32.totalorder %s175, 0
      %s178 = sadd.s32 %s177, 1
      %s179 = scalar_select %p176, %s177, %s178
      %p182 = pneg %p176
      %p183 = scmp.eq.s32.totalorder %s16, 15
      %p184 = por %p182, %p183
      %p185 = scmp.ne.s32.totalorder %s177, %s180
      %p186 = scmp.eq.s32.totalorder %s16, 0
      %p187 = por %p185, %p186
      %p188 = scmp.ne.s32.totalorder %s177, %s180
      %p189 = scmp.eq.s32.totalorder %s21, 15
      %p190 = por %p188, %p189
      %p191 = scmp.ne.s32.totalorder %s180, %s181
      %p192 = scmp.eq.s32.totalorder %s21, 0
      %p193 = por %p191, %p192
      %p194 = scmp.ne.s32.totalorder %s180, %s181
      %p195 = scmp.eq.s32.totalorder %s22, 15
      %p196 = por %p194, %p195
      %p198 = scmp.ne.s32.totalorder %s181, %s197
      %p199 = scmp.eq.s32.totalorder %s22, 0
      %p200 = por %p198, %p199
      %s202 = sadd.s32 %s201, 1
      %p205 = scmp.eq.s32.totalorder %s16, 15
      %p206 = scmp.ne.s32.totalorder %s201, %s203
      %p207 = scmp.eq.s32.totalorder %s16, 0
      %p208 = por %p206, %p207
      %p209 = scmp.ne.s32.totalorder %s201, %s203
      %p210 = scmp.eq.s32.totalorder %s21, 15
      %p211 = por %p209, %p210
      %p212 = scmp.ne.s32.totalorder %s203, %s204
      %p213 = scmp.eq.s32.totalorder %s21, 0
      %p214 = por %p212, %p213
      %p215 = scmp.ne.s32.totalorder %s203, %s204
      %p216 = scmp.eq.s32.totalorder %s22, 15
      %p217 = por %p215, %p216
      %p219 = scmp.ne.s32.totalorder %s204, %s218
      %p220 = scmp.eq.s32.totalorder %s22, 0
      %p221 = por %p219, %p220
      %s222 = ssub.s32 %s23, %s42
      %s223 = ssub.s32 %s24, %s38
      %s224 = sor.u32 %s222, %s223
      %p225 = scmp.eq.s32.totalorder %s224, 0
      %s227 = sadd.s32 %s226, 1
      %s228 = scalar_select %p225, %s226, %s227
      %p231 = pneg %p225
      %p232 = scmp.eq.s32.totalorder %s16, 15
      %p233 = por %p231, %p232
      %p234 = scmp.ne.s32.totalorder %s226, %s229
      %p235 = scmp.eq.s32.totalorder %s16, 0
      %p236 = por %p234, %p235
      %p237 = scmp.ne.s32.totalorder %s226, %s229
      %p238 = scmp.eq.s32.totalorder %s21, 15
      %p239 = por %p237, %p238
      %p240 = scmp.ne.s32.totalorder %s229, %s230
      %p241 = scmp.eq.s32.totalorder %s21, 0
      %p242 = por %p240, %p241
      %p243 = scmp.ne.s32.totalorder %s229, %s230
      %p244 = scmp.eq.s32.totalorder %s22, 15
      %p245 = por %p243, %p244
      %p247 = scmp.ne.s32.totalorder %s230, %s246
      %p248 = scmp.eq.s32.totalorder %s22, 0
      %p249 = por %p247, %p248
      %p250 = scmp.le.s32.totalorder 1, %s16
      %p251 = scmp.lt.s32.totalorder %s16, 17
      %p252 = pnand %p250, %p251
      %p253 = pneg %p252
      // Predicated region
      $region9: #{tpu_custom_call.1} parent=5 // pred_check
        _
      $region10: #{tpu_custom_call.1} parent=5 // pred_check_branch
        %255 = sbr.rel (%p252) target = $region12
      $region11: #{tpu_custom_call.1} parent=5 // pred_region
        %s256 = ssub.s32 %s16, 1
        // Predicated region
        $region13: #{tpu_custom_call.1} parent=11 // pred_check
          %p257 = pneg %p214
        $region14: #{tpu_custom_call.1} parent=11 // pred_check_branch
          %259 = sbr.rel (%p257) target = $region16
        $region15: #{tpu_custom_call.1} parent=11 // pred_region
          _
        $region16: #{tpu_custom_call.1} parent=11 // pred_fallthru
          _
      $region12: #{tpu_custom_call.1} parent=5 // pred_fallthru
        _
      %p260 = scmp.lt.s32.totalorder %s16, 16
      // Predicated region
      $region17: #{tpu_custom_call.1} parent=5 // pred_check
        %p261 = pneg %p260
      $region18: #{tpu_custom_call.1} parent=5 // pred_check_branch
        %263 = sbr.rel (%p261) target = $region20
      $region19: #{tpu_custom_call.1} parent=5 // pred_region
        // Predicated region
        $region21: #{tpu_custom_call.1} parent=19 // pred_check
          %p264 = pneg %p57
        $region22: #{tpu_custom_call.1} parent=19 // pred_check_branch
          %266 = sbr.rel (%p264) target = $region24
        $region23: #{tpu_custom_call.1} parent=19 // pred_region
          %p267 = scmp.lt.s32.totalorder %s23, 1
          %s268 = scalar_select %p267, %s23, 1
          %p269 = scmp.lt.s32.totalorder %s24, 1
          %s270 = scalar_select %p269, %s24, 1
          %s271 = smul.addr %s268, 2
          %s272 = sadd.s32 %s270, %s271
          %s273 = smul.addr %s272, 4
          %s274 = scalar_lea.vmem %s0, %s273
        $region24: #{tpu_custom_call.1} parent=19 // pred_fallthru
          _
        // Predicated region
        $region25: #{tpu_custom_call.1} parent=19 // pred_check
          %p275 = pneg %p83
        $region26: #{tpu_custom_call.1} parent=19 // pred_check_branch
          %277 = sbr.rel (%p275) target = $region28
        $region27: #{tpu_custom_call.1} parent=19 // pred_region
          %p278 = scmp.lt.s32.totalorder %s23, 1
          %s279 = scalar_select %p278, %s23, 1
          %s280 = smul.addr %s279, 2
          %s281 = smul.addr %s280, 4
          %s282 = scalar_lea.vmem %s1, %s281
        $region28: #{tpu_custom_call.1} parent=19 // pred_fallthru
          _
        // Predicated region
        $region29: #{tpu_custom_call.1} parent=19 // pred_check
          %p283 = pneg %p109
        $region30: #{tpu_custom_call.1} parent=19 // pred_check_branch
          %285 = sbr.rel (%p283) target = $region32
        $region31: #{tpu_custom_call.1} parent=19 // pred_region
          %p286 = scmp.lt.s32.totalorder %s23, 1
          %s287 = scalar_select %p286, %s23, 1
          %s288 = smul.addr %s287, 2
          %s289 = smul.addr %s288, 4
          %s290 = scalar_lea.vmem %s2, %s289
        $region32: #{tpu_custom_call.1} parent=19 // pred_fallthru
          _
        // Predicated region
        $region33: #{tpu_custom_call.1} parent=19 // pred_check
          %p291 = pneg %p135
        $region34: #{tpu_custom_call.1} parent=19 // pred_check_branch
          %293 = sbr.rel (%p291) target = $region36
        $region35: #{tpu_custom_call.1} parent=19 // pred_region
          %s294 = sand.u32 %s125, 1
          %s295 = sand.u32 %s125, 1
          %s296 = smul.addr %s295, 192
          %s297 = scalar_lea.vmem [#allocation5], %s296
          %s298 = smul.addr %s25, 16
          %s299 = smul.addr %s298, 4
          %s300 = scalar_lea.vmem %s3, %s299
          // Predicated region
          $region37: #{tpu_custom_call.1} parent=35 // pred_check
            _
          $region38: #{tpu_custom_call.1} parent=35 // pred_check_branch
            %302 = sbr.rel (0) target = $region40
          $region39: #{tpu_custom_call.1} parent=35 // pred_region
            // Predicated region
            $region41: #{tpu_custom_call.1} parent=39 // pred_check
              _
            $region42: #{tpu_custom_call.1} parent=39 // pred_check_branch
              %304 = sbr.rel target = $region44
            $region43: #{tpu_custom_call.1} parent=39 // pred_region
              // Predicated region
              $region56: #{tpu_custom_call.1} parent=43 // pred_check
                _
              $region57: #{tpu_custom_call.1} parent=43 // pred_check_branch
                %414 = sbr.rel (0) target = $region59
              $region58: #{tpu_custom_call.1} parent=43 // pred_region
                loop: start=0, step=1, limit=1
                $region60: #{tpu_custom_call.1} parent=58 // loop_pre_header
                  _
                $region61: #{tpu_custom_call.1} parent=58 // loop_header
                  %s416 = sphi 0, %s420
                  %p417 = scmp.ge.s32.totalorder %s416, 1
                  %s421 = sphi %s300, %s300
                  %s422 = sphi %s297, %s297
                $region62: #{tpu_custom_call.1} parent=58 // loop_header_branch
                  %419 = sbr.rel (%p417) target = $region66
                $region63: #{tpu_custom_call.1} parent=58 // loop_body
                  _
                $region64: #{tpu_custom_call.1} parent=58 // loop_footer
                  %s420 = sadd.s32 1, %s416
                $region65: #{tpu_custom_call.1} parent=58 // loop_footer_branch
                  %415 = sbr.rel target = $region61
                $region66: #{tpu_custom_call.1} parent=58 // loop_exit
                  _
                %s424 = ssub.s32 16, 1
                loop: start=0, step=1, limit=1
                $region67: #{tpu_custom_call.1} parent=58 // loop_pre_header
                  _
                $region68: #{tpu_custom_call.1} parent=58 // loop_header
                  %s426 = sphi 0, %s430
                  %p427 = scmp.ge.s32.totalorder %s426, 1
                  %s431 = sphi %s300, %s300
                  %s432 = sphi %s297, %s297
                $region69: #{tpu_custom_call.1} parent=58 // loop_header_branch
                  %429 = sbr.rel (%p427) target = $region73
                $region70: #{tpu_custom_call.1} parent=58 // loop_body
                  %v433 = vld [vmem:[%s431] sm:%s424]
                  %434 = vst [vmem:[%s432] sm:%s424] %v433
                  %v435 = vld [vmem:[%s431 + $0x4] sm:%s424]
                  %436 = vst [vmem:[%s432 + $0x4] sm:%s424] %v435
                  %v437 = vld [vmem:[%s431 + $0x8] sm:%s424]
                  %438 = vst [vmem:[%s432 + $0x8] sm:%s424] %v437
                  %v439 = vld [vmem:[%s431 + $0xc] sm:%s424]
                  %440 = vst [vmem:[%s432 + $0xc] sm:%s424] %v439
                  %v441 = vld [vmem:[%s431 + $0x10] sm:%s424]
                  %442 = vst [vmem:[%s432 + $0x10] sm:%s424] %v441
                  %v443 = vld [vmem:[%s431 + $0x14] sm:%s424]
                  %444 = vst [vmem:[%s432 + $0x14] sm:%s424] %v443
                  %v445 = vld [vmem:[%s431 + $0x18] sm:%s424]
                  %446 = vst [vmem:[%s432 + $0x18] sm:%s424] %v445
                  %v447 = vld [vmem:[%s431 + $0x1c] sm:%s424]
                  %448 = vst [vmem:[%s432 + $0x1c] sm:%s424] %v447
                  %v449 = vld [vmem:[%s431 + $0x20] sm:%s424]
                  %450 = vst [vmem:[%s432 + $0x20] sm:%s424] %v449
                  %v451 = vld [vmem:[%s431 + $0x24] sm:%s424]
                  %452 = vst [vmem:[%s432 + $0x24] sm:%s424] %v451
                  %v453 = vld [vmem:[%s431 + $0x28] sm:%s424]
                  %454 = vst [vmem:[%s432 + $0x28] sm:%s424] %v453
                  %v455 = vld [vmem:[%s431 + $0x2c] sm:%s424]
                  %456 = vst [vmem:[%s432 + $0x2c] sm:%s424] %v455
                  %v457 = vld [vmem:[%s431 + $0x30] sm:%s424]
                  %458 = vst [vmem:[%s432 + $0x30] sm:%s424] %v457
                  %v459 = vld [vmem:[%s431 + $0x34] sm:%s424]
                  %460 = vst [vmem:[%s432 + $0x34] sm:%s424] %v459
                  %v461 = vld [vmem:[%s431 + $0x38] sm:%s424]
                  %462 = vst [vmem:[%s432 + $0x38] sm:%s424] %v461
                  %v463 = vld [vmem:[%s431 + $0x3c] sm:%s424]
                  %464 = vst [vmem:[%s432 + $0x3c] sm:%s424] %v463
                  %v465 = vld [vmem:[%s431 + $0x100] sm:%s424]
                  %466 = vst [vmem:[%s432 + $0x40] sm:%s424] %v465
                  %v467 = vld [vmem:[%s431 + $0x104] sm:%s424]
                  %468 = vst [vmem:[%s432 + $0x44] sm:%s424] %v467
                  %v469 = vld [vmem:[%s431 + $0x108] sm:%s424]
                  %470 = vst [vmem:[%s432 + $0x48] sm:%s424] %v469
                  %v471 = vld [vmem:[%s431 + $0x10c] sm:%s424]
                  %472 = vst [vmem:[%s432 + $0x4c] sm:%s424] %v471
                  %v473 = vld [vmem:[%s431 + $0x110] sm:%s424]
                  %474 = vst [vmem:[%s432 + $0x50] sm:%s424] %v473
                  %v475 = vld [vmem:[%s431 + $0x114] sm:%s424]
                  %476 = vst [vmem:[%s432 + $0x54] sm:%s424] %v475
                  %v477 = vld [vmem:[%s431 + $0x118] sm:%s424]
                  %478 = vst [vmem:[%s432 + $0x58] sm:%s424] %v477
                  %v479 = vld [vmem:[%s431 + $0x11c] sm:%s424]
                  %480 = vst [vmem:[%s432 + $0x5c] sm:%s424] %v479
                  %v481 = vld [vmem:[%s431 + $0x120] sm:%s424]
                  %482 = vst [vmem:[%s432 + $0x60] sm:%s424] %v481
                  %v483 = vld [vmem:[%s431 + $0x124] sm:%s424]
                  %484 = vst [vmem:[%s432 + $0x64] sm:%s424] %v483
                  %v485 = vld [vmem:[%s431 + $0x128] sm:%s424]
                  %486 = vst [vmem:[%s432 + $0x68] sm:%s424] %v485
                  %v487 = vld [vmem:[%s431 + $0x12c] sm:%s424]
                  %488 = vst [vmem:[%s432 + $0x6c] sm:%s424] %v487
                  %v489 = vld [vmem:[%s431 + $0x130] sm:%s424]
                  %490 = vst [vmem:[%s432 + $0x70] sm:%s424] %v489
                  %v491 = vld [vmem:[%s431 + $0x134] sm:%s424]
                  %492 = vst [vmem:[%s432 + $0x74] sm:%s424] %v491
                  %v493 = vld [vmem:[%s431 + $0x138] sm:%s424]
                  %494 = vst [vmem:[%s432 + $0x78] sm:%s424] %v493
                  %v495 = vld [vmem:[%s431 + $0x13c] sm:%s424]
                  %496 = vst [vmem:[%s432 + $0x7c] sm:%s424] %v495
                  %v497 = vld [vmem:[%s431 + $0x200] sm:%s424]
                  %498 = vst [vmem:[%s432 + $0x80] sm:%s424] %v497
                  %v499 = vld [vmem:[%s431 + $0x204] sm:%s424]
                  %500 = vst [vmem:[%s432 + $0x84] sm:%s424] %v499
                  %v501 = vld [vmem:[%s431 + $0x208] sm:%s424]
                  %502 = vst [vmem:[%s432 + $0x88] sm:%s424] %v501
                  %v503 = vld [vmem:[%s431 + $0x20c] sm:%s424]
                  %504 = vst [vmem:[%s432 + $0x8c] sm:%s424] %v503
                  %v505 = vld [vmem:[%s431 + $0x210] sm:%s424]
                  %506 = vst [vmem:[%s432 + $0x90] sm:%s424] %v505
                  %v507 = vld [vmem:[%s431 + $0x214] sm:%s424]
                  %508 = vst [vmem:[%s432 + $0x94] sm:%s424] %v507
                  %v509 = vld [vmem:[%s431 + $0x218] sm:%s424]
                  %510 = vst [vmem:[%s432 + $0x98] sm:%s424] %v509
                  %v511 = vld [vmem:[%s431 + $0x21c] sm:%s424]
                  %512 = vst [vmem:[%s432 + $0x9c] sm:%s424] %v511
                  %v513 = vld [vmem:[%s431 + $0x220] sm:%s424]
                  %514 = vst [vmem:[%s432 + $0xa0] sm:%s424] %v513
                  %v515 = vld [vmem:[%s431 + $0x224] sm:%s424]
                  %516 = vst [vmem:[%s432 + $0xa4] sm:%s424] %v515
                  %v517 = vld [vmem:[%s431 + $0x228] sm:%s424]
                  %518 = vst [vmem:[%s432 + $0xa8] sm:%s424] %v517
                  %v519 = vld [vmem:[%s431 + $0x22c] sm:%s424]
                  %520 = vst [vmem:[%s432 + $0xac] sm:%s424] %v519
                  %v521 = vld [vmem:[%s431 + $0x230] sm:%s424]
                  %522 = vst [vmem:[%s432 + $0xb0] sm:%s424] %v521
                  %v523 = vld [vmem:[%s431 + $0x234] sm:%s424]
                  %524 = vst [vmem:[%s432 + $0xb4] sm:%s424] %v523
                  %v525 = vld [vmem:[%s431 + $0x238] sm:%s424]
                  %526 = vst [vmem:[%s432 + $0xb8] sm:%s424] %v525
                  %v527 = vld [vmem:[%s431 + $0x23c] sm:%s424]
                  %528 = vst [vmem:[%s432 + $0xbc] sm:%s424] %v527
                $region71: #{tpu_custom_call.1} parent=58 // loop_footer
                  %s430 = sadd.s32 1, %s426
                $region72: #{tpu_custom_call.1} parent=58 // loop_footer_branch
                  %425 = sbr.rel target = $region68
                $region73: #{tpu_custom_call.1} parent=58 // loop_exit
                  _
              $region59: #{tpu_custom_call.1} parent=43 // pred_fallthru
                _
            $region44: #{tpu_custom_call.1} parent=39 // pred_fallthru
              _
            // Predicated region
            $region45: #{tpu_custom_call.1} parent=39 // pred_check
              _
            $region46: #{tpu_custom_call.1} parent=39 // pred_check_branch
              %306 = sbr.rel (0) target = $region48
            $region47: #{tpu_custom_call.1} parent=39 // pred_region
              %s308 = ssub.s32 16, 1
              loop: start=0, step=1, limit=1
              $region49: #{tpu_custom_call.1} parent=47 // loop_pre_header
                _
              $region50: #{tpu_custom_call.1} parent=47 // loop_header
                %s310 = sphi 0, %s314
                %p311 = scmp.ge.s32.totalorder %s310, 1
                %s315 = sphi %s300, %s300
                %s316 = sphi %s297, %s297
              $region51: #{tpu_custom_call.1} parent=47 // loop_header_branch
                %313 = sbr.rel (%p311) target = $region55
              $region52: #{tpu_custom_call.1} parent=47 // loop_body
                %v317 = vld [vmem:[%s315] sm:%s308]
                %318 = vst [vmem:[%s316] sm:%s308] %v317
                %v319 = vld [vmem:[%s315 + $0x4] sm:%s308]
                %320 = vst [vmem:[%s316 + $0x4] sm:%s308] %v319
                %v321 = vld [vmem:[%s315 + $0x8] sm:%s308]
                %322 = vst [vmem:[%s316 + $0x8] sm:%s308] %v321
                %v323 = vld [vmem:[%s315 + $0xc] sm:%s308]
                %324 = vst [vmem:[%s316 + $0xc] sm:%s308] %v323
                %v325 = vld [vmem:[%s315 + $0x10] sm:%s308]
                %326 = vst [vmem:[%s316 + $0x10] sm:%s308] %v325
                %v327 = vld [vmem:[%s315 + $0x14] sm:%s308]
                %328 = vst [vmem:[%s316 + $0x14] sm:%s308] %v327
                %v329 = vld [vmem:[%s315 + $0x18] sm:%s308]
                %330 = vst [vmem:[%s316 + $0x18] sm:%s308] %v329
                %v331 = vld [vmem:[%s315 + $0x1c] sm:%s308]
                %332 = vst [vmem:[%s316 + $0x1c] sm:%s308] %v331
                %v333 = vld [vmem:[%s315 + $0x20] sm:%s308]
                %334 = vst [vmem:[%s316 + $0x20] sm:%s308] %v333
                %v335 = vld [vmem:[%s315 + $0x24] sm:%s308]
                %336 = vst [vmem:[%s316 + $0x24] sm:%s308] %v335
                %v337 = vld [vmem:[%s315 + $0x28] sm:%s308]
                %338 = vst [vmem:[%s316 + $0x28] sm:%s308] %v337
                %v339 = vld [vmem:[%s315 + $0x2c] sm:%s308]
                %340 = vst [vmem:[%s316 + $0x2c] sm:%s308] %v339
                %v341 = vld [vmem:[%s315 + $0x30] sm:%s308]
                %342 = vst [vmem:[%s316 + $0x30] sm:%s308] %v341
                %v343 = vld [vmem:[%s315 + $0x34] sm:%s308]
                %344 = vst [vmem:[%s316 + $0x34] sm:%s308] %v343
                %v345 = vld [vmem:[%s315 + $0x38] sm:%s308]
                %346 = vst [vmem:[%s316 + $0x38] sm:%s308] %v345
                %v347 = vld [vmem:[%s315 + $0x3c] sm:%s308]
                %348 = vst [vmem:[%s316 + $0x3c] sm:%s308] %v347
                %v349 = vld [vmem:[%s315 + $0x100] sm:%s308]
                %350 = vst [vmem:[%s316 + $0x40] sm:%s308] %v349
                %v351 = vld [vmem:[%s315 + $0x104] sm:%s308]
                %352 = vst [vmem:[%s316 + $0x44] sm:%s308] %v351
                %v353 = vld [vmem:[%s315 + $0x108] sm:%s308]
                %354 = vst [vmem:[%s316 + $0x48] sm:%s308] %v353
                %v355 = vld [vmem:[%s315 + $0x10c] sm:%s308]
                %356 = vst [vmem:[%s316 + $0x4c] sm:%s308] %v355
                %v357 = vld [vmem:[%s315 + $0x110] sm:%s308]
                %358 = vst [vmem:[%s316 + $0x50] sm:%s308] %v357
                %v359 = vld [vmem:[%s315 + $0x114] sm:%s308]
                %360 = vst [vmem:[%s316 + $0x54] sm:%s308] %v359
                %v361 = vld [vmem:[%s315 + $0x118] sm:%s308]
                %362 = vst [vmem:[%s316 + $0x58] sm:%s308] %v361
                %v363 = vld [vmem:[%s315 + $0x11c] sm:%s308]
                %364 = vst [vmem:[%s316 + $0x5c] sm:%s308] %v363
                %v365 = vld [vmem:[%s315 + $0x120] sm:%s308]
                %366 = vst [vmem:[%s316 + $0x60] sm:%s308] %v365
                %v367 = vld [vmem:[%s315 + $0x124] sm:%s308]
                %368 = vst [vmem:[%s316 + $0x64] sm:%s308] %v367
                %v369 = vld [vmem:[%s315 + $0x128] sm:%s308]
                %370 = vst [vmem:[%s316 + $0x68] sm:%s308] %v369
                %v371 = vld [vmem:[%s315 + $0x12c] sm:%s308]
                %372 = vst [vmem:[%s316 + $0x6c] sm:%s308] %v371
                %v373 = vld [vmem:[%s315 + $0x130] sm:%s308]
                %374 = vst [vmem:[%s316 + $0x70] sm:%s308] %v373
                %v375 = vld [vmem:[%s315 + $0x134] sm:%s308]
                %376 = vst [vmem:[%s316 + $0x74] sm:%s308] %v375
                %v377 = vld [vmem:[%s315 + $0x138] sm:%s308]
                %378 = vst [vmem:[%s316 + $0x78] sm:%s308] %v377
                %v379 = vld [vmem:[%s315 + $0x13c] sm:%s308]
                %380 = vst [vmem:[%s316 + $0x7c] sm:%s308] %v379
                %v381 = vld [vmem:[%s315 + $0x200] sm:%s308]
                %382 = vst [vmem:[%s316 + $0x80] sm:%s308] %v381
                %v383 = vld [vmem:[%s315 + $0x204] sm:%s308]
                %384 = vst [vmem:[%s316 + $0x84] sm:%s308] %v383
                %v385 = vld [vmem:[%s315 + $0x208] sm:%s308]
                %386 = vst [vmem:[%s316 + $0x88] sm:%s308] %v385
                %v387 = vld [vmem:[%s315 + $0x20c] sm:%s308]
                %388 = vst [vmem:[%s316 + $0x8c] sm:%s308] %v387
                %v389 = vld [vmem:[%s315 + $0x210] sm:%s308]
                %390 = vst [vmem:[%s316 + $0x90] sm:%s308] %v389
                %v391 = vld [vmem:[%s315 + $0x214] sm:%s308]
                %392 = vst [vmem:[%s316 + $0x94] sm:%s308] %v391
                %v393 = vld [vmem:[%s315 + $0x218] sm:%s308]
                %394 = vst [vmem:[%s316 + $0x98] sm:%s308] %v393
                %v395 = vld [vmem:[%s315 + $0x21c] sm:%s308]
                %396 = vst [vmem:[%s316 + $0x9c] sm:%s308] %v395
                %v397 = vld [vmem:[%s315 + $0x220] sm:%s308]
                %398 = vst [vmem:[%s316 + $0xa0] sm:%s308] %v397
                %v399 = vld [vmem:[%s315 + $0x224] sm:%s308]
                %400 = vst [vmem:[%s316 + $0xa4] sm:%s308] %v399
                %v401 = vld [vmem:[%s315 + $0x228] sm:%s308]
                %402 = vst [vmem:[%s316 + $0xa8] sm:%s308] %v401
                %v403 = vld [vmem:[%s315 + $0x22c] sm:%s308]
                %404 = vst [vmem:[%s316 + $0xac] sm:%s308] %v403
                %v405 = vld [vmem:[%s315 + $0x230] sm:%s308]
                %406 = vst [vmem:[%s316 + $0xb0] sm:%s308] %v405
                %v407 = vld [vmem:[%s315 + $0x234] sm:%s308]
                %408 = vst [vmem:[%s316 + $0xb4] sm:%s308] %v407
                %v409 = vld [vmem:[%s315 + $0x238] sm:%s308]
                %410 = vst [vmem:[%s316 + $0xb8] sm:%s308] %v409
                %v411 = vld [vmem:[%s315 + $0x23c] sm:%s308]
                %412 = vst [vmem:[%s316 + $0xbc] sm:%s308] %v411
              $region53: #{tpu_custom_call.1} parent=47 // loop_footer
                %s314 = sadd.s32 1, %s310
              $region54: #{tpu_custom_call.1} parent=47 // loop_footer_branch
                %309 = sbr.rel target = $region50
              $region55: #{tpu_custom_call.1} parent=47 // loop_exit
                _
            $region48: #{tpu_custom_call.1} parent=39 // pred_fallthru
              _
          $region40: #{tpu_custom_call.1} parent=35 // pred_fallthru
            _
          %529 = vnop
        $region36: #{tpu_custom_call.1} parent=19 // pred_fallthru
          _
        // Predicated region
        $region74: #{tpu_custom_call.1} parent=19 // pred_check
          %p530 = pneg %p161
        $region75: #{tpu_custom_call.1} parent=19 // pred_check_branch
          %532 = sbr.rel (%p530) target = $region77
        $region76: #{tpu_custom_call.1} parent=19 // pred_region
          %s533 = sand.u32 %s151, 1
          %s534 = sand.u32 %s151, 1
          %s535 = smul.addr %s534, 3
          %s536 = scalar_lea.vmem [#allocation6], %s535
          %s537 = scalar_lea.vmem %s4, %s25
          // Predicated region
          $region78: #{tpu_custom_call.1} parent=76 // pred_check
            _
          $region79: #{tpu_custom_call.1} parent=76 // pred_check_branch
            %539 = sbr.rel (0) target = $region81
          $region80: #{tpu_custom_call.1} parent=76 // pred_region
            // Predicated region
            $region82: #{tpu_custom_call.1} parent=80 // pred_check
              _
            $region83: #{tpu_custom_call.1} parent=80 // pred_check_branch
              %541 = sbr.rel target = $region85
            $region84: #{tpu_custom_call.1} parent=80 // pred_region
              // Predicated region
              $region97: #{tpu_custom_call.1} parent=84 // pred_check
                _
              $region98: #{tpu_custom_call.1} parent=84 // pred_check_branch
                %561 = sbr.rel (0) target = $region100
              $region99: #{tpu_custom_call.1} parent=84 // pred_region
                %s563 = ssub.s32 2, 1
                loop: start=0, step=1, limit=1
                $region101: #{tpu_custom_call.1} parent=99 // loop_pre_header
                  _
                $region102: #{tpu_custom_call.1} parent=99 // loop_header
                  %s565 = sphi 0, %s569
                  %p566 = scmp.ge.s32.totalorder %s565, 1
                  %s570 = sphi %s537, %s537
                  %s571 = sphi %s536, %s536
                $region103: #{tpu_custom_call.1} parent=99 // loop_header_branch
                  %568 = sbr.rel (%p566) target = $region107
                $region104: #{tpu_custom_call.1} parent=99 // loop_body
                  %v572 = vld [vmem:[%s570] sm:%s563]
                  %573 = vst [vmem:[%s571] sm:%s563] %v572
                  %v574 = vld [vmem:[%s570 + $0x4] sm:%s563]
                  %575 = vst [vmem:[%s571 + $0x1] sm:%s563] %v574
                  %v576 = vld [vmem:[%s570 + $0x8] sm:%s563]
                  %577 = vst [vmem:[%s571 + $0x2] sm:%s563] %v576
                $region105: #{tpu_custom_call.1} parent=99 // loop_footer
                  %s569 = sadd.s32 1, %s565
                $region106: #{tpu_custom_call.1} parent=99 // loop_footer_branch
                  %564 = sbr.rel target = $region102
                $region107: #{tpu_custom_call.1} parent=99 // loop_exit
                  _
              $region100: #{tpu_custom_call.1} parent=84 // pred_fallthru
                _
            $region85: #{tpu_custom_call.1} parent=80 // pred_fallthru
              _
            // Predicated region
            $region86: #{tpu_custom_call.1} parent=80 // pred_check
              _
            $region87: #{tpu_custom_call.1} parent=80 // pred_check_branch
              %543 = sbr.rel (0) target = $region89
            $region88: #{tpu_custom_call.1} parent=80 // pred_region
              %s545 = ssub.s32 2, 1
              loop: start=0, step=1, limit=1
              $region90: #{tpu_custom_call.1} parent=88 // loop_pre_header
                _
              $region91: #{tpu_custom_call.1} parent=88 // loop_header
                %s547 = sphi 0, %s551
                %p548 = scmp.ge.s32.totalorder %s547, 1
                %s552 = sphi %s537, %s537
                %s553 = sphi %s536, %s536
              $region92: #{tpu_custom_call.1} parent=88 // loop_header_branch
                %550 = sbr.rel (%p548) target = $region96
              $region93: #{tpu_custom_call.1} parent=88 // loop_body
                %v554 = vld [vmem:[%s552] sm:%s545]
                %555 = vst [vmem:[%s553] sm:%s545] %v554
                %v556 = vld [vmem:[%s552 + $0x4] sm:%s545]
                %557 = vst [vmem:[%s553 + $0x1] sm:%s545] %v556
                %v558 = vld [vmem:[%s552 + $0x8] sm:%s545]
                %559 = vst [vmem:[%s553 + $0x2] sm:%s545] %v558
              $region94: #{tpu_custom_call.1} parent=88 // loop_footer
                %s551 = sadd.s32 1, %s547
              $region95: #{tpu_custom_call.1} parent=88 // loop_footer_branch
                %546 = sbr.rel target = $region91
              $region96: #{tpu_custom_call.1} parent=88 // loop_exit
                _
            $region89: #{tpu_custom_call.1} parent=80 // pred_fallthru
              _
          $region81: #{tpu_custom_call.1} parent=76 // pred_fallthru
            _
          %578 = vnop
        $region77: #{tpu_custom_call.1} parent=19 // pred_fallthru
          _
        // Predicated region
        $region108: #{tpu_custom_call.1} parent=19 // pred_check
          %p579 = pneg %p187
        $region109: #{tpu_custom_call.1} parent=19 // pred_check_branch
          %581 = sbr.rel (%p579) target = $region111
        $region110: #{tpu_custom_call.1} parent=19 // pred_region
          %p582 = scmp.lt.s32.totalorder %s25, 3
          %s583 = scalar_select %p582, %s25, 3
          %s584 = smul.addr %s583, 4
          %s585 = smul.addr %s584, 4
          %s586 = scalar_lea.vmem %s5, %s585
        $region111: #{tpu_custom_call.1} parent=19 // pred_fallthru
          _
      $region20: #{tpu_custom_call.1} parent=5 // pred_fallthru
        _
      %p587 = scmp.le.s32.totalorder 1, %s16
      %p588 = scmp.lt.s32.totalorder %s16, 17
      %p589 = pnand %p587, %p588
      %p590 = pneg %p589
      // Predicated region
      $region112: #{tpu_custom_call.1} parent=5 // pred_check
        _
      $region113: #{tpu_custom_call.1} parent=5 // pred_check_branch
        %592 = sbr.rel (%p589) target = $region115
      $region114: #{tpu_custom_call.1} parent=5 // pred_region
        %s593 = ssub.s32 %s16, 1
        %s594 = sand.u32 %s128, 1
        %s595 = sand.u32 %s128, 1
        %s596 = smul.addr %s595, 192
        %s597 = scalar_lea.vmem [#allocation5], %s596
        // Predicated region
        $region116: #{tpu_custom_call.1} parent=114 // pred_check
          %p598 = pneg %p141
        $region117: #{tpu_custom_call.1} parent=114 // pred_check_branch
          %600 = sbr.rel (%p598) target = $region119
        $region118: #{tpu_custom_call.1} parent=114 // pred_region
          _
        $region119: #{tpu_custom_call.1} parent=114 // pred_fallthru
          _
        %s601 = sand.u32 %s154, 1
        %s602 = sand.u32 %s154, 1
        %s603 = smul.addr %s602, 3
        %s604 = scalar_lea.vmem [#allocation6], %s603
        // Predicated region
        $region120: #{tpu_custom_call.1} parent=114 // pred_check
          %p605 = pneg %p167
        $region121: #{tpu_custom_call.1} parent=114 // pred_check_branch
          %607 = sbr.rel (%p605) target = $region123
        $region122: #{tpu_custom_call.1} parent=114 // pred_region
          _
        $region123: #{tpu_custom_call.1} parent=114 // pred_fallthru
          _
        %p608 = scmp.lt.s32.totalorder %s26, 1
        %s609 = scalar_select %p608, %s26, 1
        %p610 = scmp.lt.s32.totalorder %s27, 1
        %s611 = scalar_select %p610, %s27, 1
        %s612 = smul.addr %s609, 2
        %s613 = sadd.s32 %s611, %s612
        %s614 = smul.addr %s613, 4
        %s615 = scalar_lea.vmem %s0, %s614
        %p616 = pneg %p63
        %p617 = pneg %p60
        %p618 = scmp.lt.s32.totalorder %s26, 1
        %s619 = scalar_select %p618, %s26, 1
        %s620 = smul.addr %s619, 2
        %s621 = smul.addr %s620, 4
        %s622 = scalar_lea.vmem %s1, %s621
        %p623 = pneg %p89
        %p624 = pneg %p86
        %p625 = scmp.lt.s32.totalorder %s26, 1
        %s626 = scalar_select %p625, %s26, 1
        %s627 = smul.addr %s626, 2
        %s628 = smul.addr %s627, 4
        %s629 = scalar_lea.vmem %s2, %s628
        %p630 = pneg %p115
        %p631 = pneg %p112
        %s632 = sand.u32 %s128, 1
        %s633 = sand.u32 %s128, 1
        %s634 = smul.addr %s633, 192
        %s635 = scalar_lea.vmem [#allocation5], %s634
        %p636 = pneg %p141
        %p637 = pneg %p138
        %s638 = sand.u32 %s154, 1
        %s639 = sand.u32 %s154, 1
        %s640 = smul.addr %s639, 3
        %s641 = scalar_lea.vmem [#allocation6], %s640
        %p642 = pneg %p167
        %p643 = pneg %p164
        %p644 = scmp.lt.s32.totalorder %s28, 3
        %s645 = scalar_select %p644, %s28, 3
        %s646 = smul.addr %s645, 4
        %s647 = smul.addr %s646, 4
        %s648 = scalar_lea.vmem %s5, %s647
        %p649 = pneg %p193
        %p650 = pneg %p190
        %p651 = pneg %p214
        %p652 = pneg %p211
        %p653 = pneg %p242
        %p654 = pneg %p239
        %s655 = sand.u32 %s229, 1
        %s656 = scalar_lea.sflag [#allocation8], %s655
        %s657 = sand.u32 %s229, 1
        %s658 = smul.addr %s657, 8
        %s659 = scalar_lea.vmem [#allocation7], %s658
        %p660 = scmp.lt.s32.totalorder %s26, 1
        %s661 = scalar_select %p660, %s26, 1
        %p662 = scmp.lt.s32.totalorder %s27, 1
        %s663 = scalar_select %p662, %s27, 1
        %s664 = smul.addr %s661, 2
        %s665 = sadd.s32 %s663, %s664
        %s666 = smul.addr %s665, 4
        %s667 = scalar_lea.vmem %s0, %s666
        %p668 = scmp.lt.s32.totalorder %s26, 1
        %s669 = scalar_select %p668, %s26, 1
        %s670 = smul.addr %s669, 2
        %s671 = smul.addr %s670, 4
        %s672 = scalar_lea.vmem %s1, %s671
        %p673 = scmp.lt.s32.totalorder %s26, 1
        %s674 = scalar_select %p673, %s26, 1
        %s675 = smul.addr %s674, 2
        %s676 = smul.addr %s675, 4
        %s677 = scalar_lea.vmem %s2, %s676
        %p678 = scmp.lt.s32.totalorder %s28, 3
        %s679 = scalar_select %p678, %s28, 3
        %s680 = smul.addr %s679, 4
        %s681 = smul.addr %s680, 4
        %s682 = scalar_lea.vmem %s5, %s681
        %v684 = vld [vmem:[%s667] sm:$0xf]
        %p685 = scmp.eq.s32.totalorder %s27, 0
        // Predicated region
        $region124: #{tpu_custom_call.1} parent=114 // pred_check
          %p686 = pneg %p685
        $region125: #{tpu_custom_call.1} parent=114 // pred_check_branch
          %688 = sbr.rel (%p686) target = $region127
        $region126: #{tpu_custom_call.1} parent=114 // pred_region
          %v689 = vld [vmem:[%s672] sm:$0xf]
          %v690 = vld [vmem:[%s672 + $0x4] sm:$0xf]
          %v691 = vld [vmem:[%s677] sm:$0xf]
          %v692 = vld [vmem:[%s677 + $0x4] sm:$0xf]
          %s693 = scalar_lea.vmem %s597, 64 [#allocation5]
          %v694 = vld [vmem:[%s693] sm:$0xf]
          %v695 = vld [vmem:[%s693 + $0x4] sm:$0xf]
          %v696 = vld [vmem:[%s693 + $0x8] sm:$0xf]
          %v697 = vld [vmem:[%s693 + $0xc] sm:$0xf]
          %v698 = vld [vmem:[%s693 + $0x10] sm:$0xf]
          %v699 = vld [vmem:[%s693 + $0x14] sm:$0xf]
          %v700 = vld [vmem:[%s693 + $0x18] sm:$0xf]
          %v701 = vld [vmem:[%s693 + $0x1c] sm:$0xf]
          %v702 = vld [vmem:[%s693 + $0x20] sm:$0xf]
          %v703 = vld [vmem:[%s693 + $0x24] sm:$0xf]
          %v704 = vld [vmem:[%s693 + $0x28] sm:$0xf]
          %v705 = vld [vmem:[%s693 + $0x2c] sm:$0xf]
          %v706 = vld [vmem:[%s693 + $0x30] sm:$0xf]
          %v707 = vld [vmem:[%s693 + $0x34] sm:$0xf]
          %v708 = vld [vmem:[%s693 + $0x38] sm:$0xf]
          %v709 = vld [vmem:[%s693 + $0x3c] sm:$0xf]
          %s710 = scalar_lea.vmem %s597, 128 [#allocation5]
          %v711 = vld [vmem:[%s710] sm:$0xf]
          %v712 = vld [vmem:[%s710 + $0x4] sm:$0xf]
          %v713 = vld [vmem:[%s710 + $0x8] sm:$0xf]
          %v714 = vld [vmem:[%s710 + $0xc] sm:$0xf]
          %v715 = vld [vmem:[%s710 + $0x10] sm:$0xf]
          %v716 = vld [vmem:[%s710 + $0x14] sm:$0xf]
          %v717 = vld [vmem:[%s710 + $0x18] sm:$0xf]
          %v718 = vld [vmem:[%s710 + $0x1c] sm:$0xf]
          %v719 = vld [vmem:[%s710 + $0x20] sm:$0xf]
          %v720 = vld [vmem:[%s710 + $0x24] sm:$0xf]
          %v721 = vld [vmem:[%s710 + $0x28] sm:$0xf]
          %v722 = vld [vmem:[%s710 + $0x2c] sm:$0xf]
          %v723 = vld [vmem:[%s710 + $0x30] sm:$0xf]
          %v724 = vld [vmem:[%s710 + $0x34] sm:$0xf]
          %v725 = vld [vmem:[%s710 + $0x38] sm:$0xf]
          %v726 = vld [vmem:[%s710 + $0x3c] sm:$0xf]
          %s727 = scalar_lea.vmem %s604, 1 [#allocation6]
          %v728 = vld [vmem:[%s727] sm:$0x1]
          %s729 = scalar_lea.vmem %s604, 2 [#allocation6]
          %v730 = vld [vmem:[%s729] sm:$0x1]
          %v732 = vlaneseq
          %v733 = vshrl.u32 %v732, 7
          %v734 = vsub.s32 0, %v733
          %v735 = vrot.slane %v728, %v734
          %v739 = vunpack.c.l.b16 %v689
          %v740 = vunpack.c.l.b16 %v690
          %v741 = vpack.c.b16 %v740, %v739
          %v759 = vunpack.c.l.b16 %v694
          %v760 = vunpack.c.l.b16 %v695
          %v761 = vunpack.c.l.b16 %v696
          %v762 = vunpack.c.l.b16 %v697
          %v763 = vunpack.c.l.b16 %v698
          %v764 = vunpack.c.l.b16 %v699
          %v765 = vunpack.c.l.b16 %v700
          %v766 = vunpack.c.l.b16 %v701
          %v767 = vunpack.c.l.b16 %v702
          %v768 = vunpack.c.l.b16 %v703
          %v769 = vunpack.c.l.b16 %v704
          %v770 = vunpack.c.l.b16 %v705
          %v771 = vunpack.c.l.b16 %v706
          %v772 = vunpack.c.l.b16 %v707
          %v773 = vunpack.c.l.b16 %v708
          %v774 = vunpack.c.l.b16 %v709
          %v775 = vpack.c.b16 %v760, %v759
          %v776 = vpack.c.b16 %v762, %v761
          %v777 = vpack.c.b16 %v764, %v763
          %v778 = vpack.c.b16 %v766, %v765
          %v779 = vpack.c.b16 %v768, %v767
          %v780 = vpack.c.b16 %v770, %v769
          %v781 = vpack.c.b16 %v772, %v771
          %v782 = vpack.c.b16 %v774, %v773
          %791 = vmatprep.subr.bf16.mxu0 0
          %792 = vmatpush1.bf16.msra.mxu0 %v782
          %793 = vmatprep.subr.bf16.mxu0 0
          %794 = vmatpush1.bf16.msra.mxu0 %v781
          %795 = vmatprep.subr.bf16.mxu0 0
          %796 = vmatpush1.bf16.msra.mxu0 %v780
          %797 = vmatprep.subr.bf16.mxu0 0
          %798 = vmatpush1.bf16.msra.mxu0 %v779
          %799 = vmatprep.subr.bf16.mxu0 0
          %800 = vmatpush1.bf16.msra.mxu0 %v778
          %801 = vmatprep.subr.bf16.mxu0 0
          %802 = vmatpush1.bf16.msra.mxu0 %v777
          %803 = vmatprep.subr.bf16.mxu0 0
          %804 = vmatpush1.bf16.msra.mxu0 %v776
          %805 = vmatprep.subr.bf16.mxu0 0
          %806 = vmatpush1.bf16.msra.mxu0 %v775
          %807 = vmatprep.subr.bf16.mxu0 0
          %808 = vmatpush2.bf16.msra.mxu0 0
          %809 = vmatprep.subr.bf16.mxu0 0
          %810 = vmatpush2.bf16.msra.mxu0 0
          %811 = vmatprep.subr.bf16.mxu0 0
          %812 = vmatpush2.bf16.msra.mxu0 0
          %813 = vmatprep.subr.bf16.mxu0 0
          %814 = vmatpush2.bf16.msra.mxu0 0
          %815 = vmatprep.subr.bf16.mxu0 0
          %816 = vmatpush2.bf16.msra.mxu0 0
          %817 = vmatprep.subr.bf16.mxu0 0
          %818 = vmatpush2.bf16.msra.mxu0 0
          %819 = vmatprep.subr.bf16.mxu0 0
          %820 = vmatpush2.bf16.msra.mxu0 0
          %821 = vmatprep.subr.bf16.mxu0 0
          %822 = vmatpush2.bf16.msra.mxu0 0
          %823 = vmatprep.mubr.bf16.mxu0 0
          %824 = vmatmul.mubr.bf16.gmra.mxu0 %v741
          %v825 = vpop.f32.mrf.mxu0
          %v826 = vadd.f32 %v735, %v825
          %v827 = vpop.f32.mrf.mxu0
          %v828 = vpop.f32.mrf.mxu0
          %v829 = vadd.f32 %v735, %v828
          %v830 = vpop.f32.mrf.mxu0
          %831 = vdwg.mxu0
          %v832 = vpack.c.bf16 %v829, %v826
          %v834 = vunpack.c.l.b16 %v832
          %v835 = vunpack.c.h.b16 %v832
          %v836 = vpack.c.b16 %v834, %v834
          %v837 = vpack.c.b16 %v835, %v835
          %s840 = smul.u32 %s28, 2
          %s841 = smul.addr %s840, 4
          %s842 = scalar_lea.vmem [#allocation3], %s841
          %vm843 = vcmask 257024
          %844 = vst.msk [vmem:[%s842] sm:$0xf] %vm843, %v836
          %845 = vst.msk [vmem:[%s842 + $0x4] sm:$0xf] %vm843, %v837
          %v847 = vlaneseq
          %v848 = vshrl.u32 %v847, 7
          %v849 = vsub.s32 0, %v848
          %v850 = vrot.slane %v730, %v849
          %v854 = vunpack.c.l.b16 %v691
          %v855 = vunpack.c.l.b16 %v692
          %v856 = vpack.c.b16 %v855, %v854
          %v874 = vunpack.c.l.b16 %v711
          %v875 = vunpack.c.l.b16 %v712
          %v876 = vunpack.c.l.b16 %v713
          %v877 = vunpack.c.l.b16 %v714
          %v878 = vunpack.c.l.b16 %v715
          %v879 = vunpack.c.l.b16 %v716
          %v880 = vunpack.c.l.b16 %v717
          %v881 = vunpack.c.l.b16 %v718
          %v882 = vunpack.c.l.b16 %v719
          %v883 = vunpack.c.l.b16 %v720
          %v884 = vunpack.c.l.b16 %v721
          %v885 = vunpack.c.l.b16 %v722
          %v886 = vunpack.c.l.b16 %v723
          %v887 = vunpack.c.l.b16 %v724
          %v888 = vunpack.c.l.b16 %v725
          %v889 = vunpack.c.l.b16 %v726
          %v890 = vpack.c.b16 %v875, %v874
          %v891 = vpack.c.b16 %v877, %v876
          %v892 = vpack.c.b16 %v879, %v878
          %v893 = vpack.c.b16 %v881, %v880
          %v894 = vpack.c.b16 %v883, %v882
          %v895 = vpack.c.b16 %v885, %v884
          %v896 = vpack.c.b16 %v887, %v886
          %v897 = vpack.c.b16 %v889, %v888
          %906 = vmatprep.subr.bf16.mxu0 0
          %907 = vmatpush1.bf16.msra.mxu0 %v897
          %908 = vmatprep.subr.bf16.mxu0 0
          %909 = vmatpush1.bf16.msra.mxu0 %v896
          %910 = vmatprep.subr.bf16.mxu0 0
          %911 = vmatpush1.bf16.msra.mxu0 %v895
          %912 = vmatprep.subr.bf16.mxu0 0
          %913 = vmatpush1.bf16.msra.mxu0 %v894
          %914 = vmatprep.subr.bf16.mxu0 0
          %915 = vmatpush1.bf16.msra.mxu0 %v893
          %916 = vmatprep.subr.bf16.mxu0 0
          %917 = vmatpush1.bf16.msra.mxu0 %v892
          %918 = vmatprep.subr.bf16.mxu0 0
          %919 = vmatpush1.bf16.msra.mxu0 %v891
          %920 = vmatprep.subr.bf16.mxu0 0
          %921 = vmatpush1.bf16.msra.mxu0 %v890
          %922 = vmatprep.subr.bf16.mxu0 0
          %923 = vmatpush2.bf16.msra.mxu0 0
          %924 = vmatprep.subr.bf16.mxu0 0
          %925 = vmatpush2.bf16.msra.mxu0 0
          %926 = vmatprep.subr.bf16.mxu0 0
          %927 = vmatpush2.bf16.msra.mxu0 0
          %928 = vmatprep.subr.bf16.mxu0 0
          %929 = vmatpush2.bf16.msra.mxu0 0
          %930 = vmatprep.subr.bf16.mxu0 0
          %931 = vmatpush2.bf16.msra.mxu0 0
          %932 = vmatprep.subr.bf16.mxu0 0
          %933 = vmatpush2.bf16.msra.mxu0 0
          %934 = vmatprep.subr.bf16.mxu0 0
          %935 = vmatpush2.bf16.msra.mxu0 0
          %936 = vmatprep.subr.bf16.mxu0 0
          %937 = vmatpush2.bf16.msra.mxu0 0
          %938 = vmatprep.mubr.bf16.mxu0 0
          %939 = vmatmul.mubr.bf16.gmra.mxu0 %v856
          %v940 = vpop.f32.mrf.mxu0
          %v941 = vadd.f32 %v850, %v940
          %v942 = vpop.f32.mrf.mxu0
          %v943 = vpop.f32.mrf.mxu0
          %v944 = vadd.f32 %v850, %v943
          %v945 = vpop.f32.mrf.mxu0
          %946 = vdwg.mxu0
          %v947 = vpack.c.bf16 %v944, %v941
          %v949 = vunpack.c.l.b16 %v947
          %v950 = vunpack.c.h.b16 %v947
          %v951 = vpack.c.b16 %v949, %v949
          %v952 = vpack.c.b16 %v950, %v950
          %s955 = smul.addr %s840, 4
          %s956 = scalar_lea.vmem [#allocation4], %s955
          %957 = vst.msk [vmem:[%s956] sm:$0xf] %vm843, %v951
          %958 = vst.msk [vmem:[%s956 + $0x4] sm:$0xf] %vm843, %v952
        $region127: #{tpu_custom_call.1} parent=114 // pred_fallthru
          _
        %v959 = vld [vmem:[%s597] sm:$0xf]
        %v960 = vld [vmem:[%s597 + $0x4] sm:$0xf]
        %v961 = vld [vmem:[%s597 + $0x8] sm:$0xf]
        %v962 = vld [vmem:[%s597 + $0xc] sm:$0xf]
        %v963 = vld [vmem:[%s597 + $0x10] sm:$0xf]
        %v964 = vld [vmem:[%s597 + $0x14] sm:$0xf]
        %v965 = vld [vmem:[%s597 + $0x18] sm:$0xf]
        %v966 = vld [vmem:[%s597 + $0x1c] sm:$0xf]
        %v967 = vld [vmem:[%s597 + $0x20] sm:$0xf]
        %v968 = vld [vmem:[%s597 + $0x24] sm:$0xf]
        %v969 = vld [vmem:[%s597 + $0x28] sm:$0xf]
        %v970 = vld [vmem:[%s597 + $0x2c] sm:$0xf]
        %v971 = vld [vmem:[%s597 + $0x30] sm:$0xf]
        %v972 = vld [vmem:[%s597 + $0x34] sm:$0xf]
        %v973 = vld [vmem:[%s597 + $0x38] sm:$0xf]
        %v974 = vld [vmem:[%s597 + $0x3c] sm:$0xf]
        %v975 = vld [vmem:[%s604] sm:$0x1]
        %v977 = vlaneseq
        %v978 = vshrl.u32 %v977, 7
        %v979 = vsub.s32 0, %v978
        %v980 = vrot.slane %v975, %v979
        %v998 = vunpack.c.l.b16 %v959
        %v999 = vunpack.c.l.b16 %v960
        %v1000 = vunpack.c.l.b16 %v961
        %v1001 = vunpack.c.l.b16 %v962
        %v1002 = vunpack.c.l.b16 %v963
        %v1003 = vunpack.c.l.b16 %v964
        %v1004 = vunpack.c.l.b16 %v965
        %v1005 = vunpack.c.l.b16 %v966
        %v1006 = vunpack.c.l.b16 %v967
        %v1007 = vunpack.c.l.b16 %v968
        %v1008 = vunpack.c.l.b16 %v969
        %v1009 = vunpack.c.l.b16 %v970
        %v1010 = vunpack.c.l.b16 %v971
        %v1011 = vunpack.c.l.b16 %v972
        %v1012 = vunpack.c.l.b16 %v973
        %v1013 = vunpack.c.l.b16 %v974
        %v1014 = vpack.c.b16 %v999, %v998
        %v1015 = vpack.c.b16 %v1001, %v1000
        %v1016 = vpack.c.b16 %v1003, %v1002
        %v1017 = vpack.c.b16 %v1005, %v1004
        %v1018 = vpack.c.b16 %v1007, %v1006
        %v1019 = vpack.c.b16 %v1009, %v1008
        %v1020 = vpack.c.b16 %v1011, %v1010
        %v1021 = vpack.c.b16 %v1013, %v1012
        %1030 = vmatprep.subr.bf16.mxu0 0
        %1031 = vmatpush1.bf16.msra.mxu0 %v1021
        %1032 = vmatprep.subr.bf16.mxu0 0
        %1033 = vmatpush1.bf16.msra.mxu0 %v1020
        %1034 = vmatprep.subr.bf16.mxu0 0
        %1035 = vmatpush1.bf16.msra.mxu0 %v1019
        %1036 = vmatprep.subr.bf16.mxu0 0
        %1037 = vmatpush1.bf16.msra.mxu0 %v1018
        %1038 = vmatprep.subr.bf16.mxu0 0
        %1039 = vmatpush1.bf16.msra.mxu0 %v1017
        %1040 = vmatprep.subr.bf16.mxu0 0
        %1041 = vmatpush1.bf16.msra.mxu0 %v1016
        %1042 = vmatprep.subr.bf16.mxu0 0
        %1043 = vmatpush1.bf16.msra.mxu0 %v1015
        %1044 = vmatprep.subr.bf16.mxu0 0
        %1045 = vmatpush1.bf16.msra.mxu0 %v1014
        %1046 = vmatprep.subr.bf16.mxu0 0
        %1047 = vmatpush2.bf16.msra.mxu0 0
        %1048 = vmatprep.subr.bf16.mxu0 0
        %1049 = vmatpush2.bf16.msra.mxu0 0
        %1050 = vmatprep.subr.bf16.mxu0 0
        %1051 = vmatpush2.bf16.msra.mxu0 0
        %1052 = vmatprep.subr.bf16.mxu0 0
        %1053 = vmatpush2.bf16.msra.mxu0 0
        %1054 = vmatprep.subr.bf16.mxu0 0
        %1055 = vmatpush2.bf16.msra.mxu0 0
        %1056 = vmatprep.subr.bf16.mxu0 0
        %1057 = vmatpush2.bf16.msra.mxu0 0
        %1058 = vmatprep.subr.bf16.mxu0 0
        %1059 = vmatpush2.bf16.msra.mxu0 0
        %1060 = vmatprep.subr.bf16.mxu0 0
        %1061 = vmatpush2.bf16.msra.mxu0 0
        %1062 = vmatprep.mubr.bf16.mxu0 0
        %1063 = vmatmul.mubr.bf16.gmra.mxu0 %v684
        %v1064 = vpop.f32.mrf.mxu0
        %v1065 = vadd.f32 %v980, %v1064
        %v1066 = vpop.f32.mrf.mxu0
        %v1067 = vpop.f32.mrf.mxu0
        %v1068 = vpop.f32.mrf.mxu0
        %1069 = vdwg.mxu0
        %v1070 = vmul.f32 %v1065, 0.17677669
        %v1071 = vpack.c.bf16 %v1070, %v1070
        %s1072 = smul.u32 %s28, 2
        %s1073 = smul.addr %s1072, 4
        %s1074 = scalar_lea.vmem [#allocation3], %s1073
        %v1075 = vld [vmem:[%s1074] sm:$0xf]
        %v1076 = vld [vmem:[%s1074 + $0x4] sm:$0xf]
        %s1077 = smul.addr %s1072, 4
        %s1078 = scalar_lea.vmem [#allocation4], %s1077
        %v1079 = vld [vmem:[%s1078] sm:$0xf]
        %v1080 = vld [vmem:[%s1078 + $0x4] sm:$0xf]
        %v1083 = vunpack.c.l.b16 %v1075
        %v1084 = vunpack.c.l.b16 %v1076
        %v1085 = vpack.c.b16 %v1084, %v1083
        %vm1086 = vcmask 261120
        %v1088 = vsel %vm1086, %v1071, 0
        %v1091 = vsel %vm1086, %v1085, 0
        %1093 = vmatprep.subr.bf16.mxu0 0
        %1094 = vmatpush1.bf16.xpose.msra.mxu0 0
        %1095 = vmatprep.subr.bf16.mxu0 0
        %1096 = vmatpush1.bf16.xpose.msra.mxu0 0
        %1097 = vmatprep.subr.bf16.mxu0 0
        %1098 = vmatpush1.bf16.xpose.msra.mxu0 0
        %1099 = vmatprep.subr.bf16.mxu0 0
        %1100 = vmatpush1.bf16.xpose.msra.mxu0 0
        %1101 = vmatprep.subr.bf16.mxu0 0
        %1102 = vmatpush1.bf16.xpose.msra.mxu0 0
        %1103 = vmatprep.subr.bf16.mxu0 0
        %1104 = vmatpush1.bf16.xpose.msra.mxu0 0
        %1105 = vmatprep.subr.bf16.mxu0 0
        %1106 = vmatpush1.bf16.xpose.msra.mxu0 0
        %1107 = vmatprep.subr.bf16.mxu0 0
        %1108 = vmatpush1.bf16.xpose.msra.mxu0 %v1091
        %1109 = vmatprep.subr.bf16.mxu0 0
        %1110 = vmatpush2.bf16.xpose.msra.mxu0 0
        %1111 = vmatprep.subr.bf16.mxu0 0
        %1112 = vmatpush2.bf16.xpose.msra.mxu0 0
        %1113 = vmatprep.subr.bf16.mxu0 0
        %1114 = vmatpush2.bf16.xpose.msra.mxu0 0
        %1115 = vmatprep.subr.bf16.mxu0 0
        %1116 = vmatpush2.bf16.xpose.msra.mxu0 0
        %1117 = vmatprep.subr.bf16.mxu0 0
        %1118 = vmatpush2.bf16.xpose.msra.mxu0 0
        %1119 = vmatprep.subr.bf16.mxu0 0
        %1120 = vmatpush2.bf16.xpose.msra.mxu0 0
        %1121 = vmatprep.subr.bf16.mxu0 0
        %1122 = vmatpush2.bf16.xpose.msra.mxu0 0
        %1123 = vmatprep.subr.bf16.mxu0 0
        %1124 = vmatpush2.bf16.xpose.msra.mxu0 0
        %1125 = vmatprep.mubr.bf16.mxu0 0
        %1126 = vmatmul.mubr.bf16.gmra.mxu0 %v1088
        %v1127 = vpop.f32.mrf.mxu0
        %v1128 = vadd.f32 0.0, %v1127
        %v1129 = vpop.f32.mrf.mxu0
        %v1130 = vpop.f32.mrf.mxu0
        %v1131 = vpop.f32.mrf.mxu0
        %1132 = vdwg.mxu0
        %vm1133 = vcmask 130048
        %v1134 = vsel %vm1133, %v1128, -inf
        %1135 = vmax.xlane.f32.xlu0 %v1134
        %v1136 = vpop.xlane.xlu0 %1135
        %v1137 = vsub.f32 %v1128, %v1136
        %v1138 = vmul.f32 %v1137, 1.442695
        %v1139 = vpow.pop %v1138
        %v1140 = vsel %vm1133, %v1139, 0.0
        %1141 = vadd.xlane.f32.xlu0 %v1140
        %v1142 = vpop.xlane.xlu0 %1141
        %v1143 = vrcp.pop %v1142
        %v1144 = vmul.f32 %v1139, %v1143
        %v1145 = vpack.c.bf16 %v1144, %v1144
        %v1148 = vunpack.c.l.b16 %v1079
        %v1149 = vunpack.c.l.b16 %v1080
        %v1150 = vpack.c.b16 %v1149, %v1148
        %v1153 = vsel %vm1133, %v1145, 0
        %1155 = vmatprep.subr.bf16.mxu0 0
        %1156 = vmatpush1.bf16.msra.mxu0 0
        %1157 = vmatprep.subr.bf16.mxu0 0
        %1158 = vmatpush1.bf16.msra.mxu0 0
        %1159 = vmatprep.subr.bf16.mxu0 0
        %1160 = vmatpush1.bf16.msra.mxu0 0
        %1161 = vmatprep.subr.bf16.mxu0 0
        %1162 = vmatpush1.bf16.msra.mxu0 0
        %1163 = vmatprep.subr.bf16.mxu0 0
        %1164 = vmatpush1.bf16.msra.mxu0 0
        %1165 = vmatprep.subr.bf16.mxu0 0
        %1166 = vmatpush1.bf16.msra.mxu0 0
        %1167 = vmatprep.subr.bf16.mxu0 0
        %1168 = vmatpush1.bf16.msra.mxu0 0
        %1169 = vmatprep.subr.bf16.mxu0 0
        %1170 = vmatpush1.bf16.msra.mxu0 %v1150
        %1171 = vmatprep.subr.bf16.mxu0 0
        %1172 = vmatpush2.bf16.msra.mxu0 0
        %1173 = vmatprep.subr.bf16.mxu0 0
        %1174 = vmatpush2.bf16.msra.mxu0 0
        %1175 = vmatprep.subr.bf16.mxu0 0
        %1176 = vmatpush2.bf16.msra.mxu0 0
        %1177 = vmatprep.subr.bf16.mxu0 0
        %1178 = vmatpush2.bf16.msra.mxu0 0
        %1179 = vmatprep.subr.bf16.mxu0 0
        %1180 = vmatpush2.bf16.msra.mxu0 0
        %1181 = vmatprep.subr.bf16.mxu0 0
        %1182 = vmatpush2.bf16.msra.mxu0 0
        %1183 = vmatprep.subr.bf16.mxu0 0
        %1184 = vmatpush2.bf16.msra.mxu0 0
        %1185 = vmatprep.subr.bf16.mxu0 0
        %1186 = vmatpush2.bf16.msra.mxu0 0
        %1187 = vmatprep.mubr.bf16.mxu0 0
        %1188 = vmatmul.mubr.bf16.gmra.mxu0 %v1153
        %v1189 = vpop.f32.mrf.mxu0
        %v1190 = vadd.f32 0.0, %v1189
        %v1191 = vpop.f32.mrf.mxu0
        %v1192 = vpop.f32.mrf.mxu0
        %v1193 = vpop.f32.mrf.mxu0
        %1194 = vdwg.mxu0
        %v1195 = vld [vmem:[%s682] sm:$0xf]
        %v1196 = vld [vmem:[%s682 + $0x4] sm:$0xf]
        %v1197 = vld [vmem:[%s682 + $0x8] sm:$0xf]
        %v1198 = vld [vmem:[%s682 + $0xc] sm:$0xf]
        %p1199 = scmp.eq.s32.totalorder %s28, 0
        // Predicated region
        $region128: #{tpu_custom_call.1} parent=114 // pred_check
          %p1200 = pneg %p1199
        $region129: #{tpu_custom_call.1} parent=114 // pred_check_branch
          %1202 = sbr.rel (%p1200) target = $region131
        $region130: #{tpu_custom_call.1} parent=114 // pred_region
          %1203 = vst [vmem:[#allocation2] sm:$0xff] 0.0
        $region131: #{tpu_custom_call.1} parent=114 // pred_fallthru
          _
        %v1204 = vld [vmem:[#allocation2] sm:$0xff]
        %v1205 = vpack.c.bf16 %v1190, %v1190
        %v1210 = vunpack.c.l.b16 %v1195
        %v1211 = vunpack.c.l.b16 %v1196
        %v1212 = vunpack.c.l.b16 %v1197
        %v1213 = vunpack.c.l.b16 %v1198
        %v1214 = vpack.c.b16 %v1211, %v1210
        %v1215 = vpack.c.b16 %v1213, %v1212
        %v1219 = vsel %vm1086, %v1205, 0
        %1221 = vmatprep.subr.bf16.mxu0 0
        %1222 = vmatpush1.bf16.msra.mxu0 0
        %1223 = vmatprep.subr.bf16.mxu0 0
        %1224 = vmatpush1.bf16.msra.mxu0 0
        %1225 = vmatprep.subr.bf16.mxu0 0
        %1226 = vmatpush1.bf16.msra.mxu0 0
        %1227 = vmatprep.subr.bf16.mxu0 0
        %1228 = vmatpush1.bf16.msra.mxu0 0
        %1229 = vmatprep.subr.bf16.mxu0 0
        %1230 = vmatpush1.bf16.msra.mxu0 0
        %1231 = vmatprep.subr.bf16.mxu0 0
        %1232 = vmatpush1.bf16.msra.mxu0 0
        %1233 = vmatprep.subr.bf16.mxu0 0
        %1234 = vmatpush1.bf16.msra.mxu0 %v1215
        %1235 = vmatprep.subr.bf16.mxu0 0
        %1236 = vmatpush1.bf16.msra.mxu0 %v1214
        %1237 = vmatprep.subr.bf16.mxu0 0
        %1238 = vmatpush2.bf16.msra.mxu0 0
        %1239 = vmatprep.subr.bf16.mxu0 0
        %1240 = vmatpush2.bf16.msra.mxu0 0
        %1241 = vmatprep.subr.bf16.mxu0 0
        %1242 = vmatpush2.bf16.msra.mxu0 0
        %1243 = vmatprep.subr.bf16.mxu0 0
        %1244 = vmatpush2.bf16.msra.mxu0 0
        %1245 = vmatprep.subr.bf16.mxu0 0
        %1246 = vmatpush2.bf16.msra.mxu0 0
        %1247 = vmatprep.subr.bf16.mxu0 0
        %1248 = vmatpush2.bf16.msra.mxu0 0
        %1249 = vmatprep.subr.bf16.mxu0 0
        %1250 = vmatpush2.bf16.msra.mxu0 0
        %1251 = vmatprep.subr.bf16.mxu0 0
        %1252 = vmatpush2.bf16.msra.mxu0 0
        %1253 = vmatprep.mubr.bf16.mxu0 0
        %1254 = vmatmul.mubr.bf16.gmra.mxu0 %v1219
        %v1255 = vpop.f32.mrf.mxu0
        %v1256 = vadd.f32 0.0, %v1255
        %v1257 = vpop.f32.mrf.mxu0
        %v1258 = vpop.f32.mrf.mxu0
        %v1259 = vpop.f32.mrf.mxu0
        %1260 = vdwg.mxu0
        %v1261 = vadd.f32 %v1204, %v1256
        %1262 = vst [vmem:[#allocation2] sm:$0xff] %v1261
        %p1263 = scmp.eq.s32.totalorder %s28, 3
        // Predicated region
        $region132: #{tpu_custom_call.1} parent=114 // pred_check
          %p1264 = pneg %p1263
        $region133: #{tpu_custom_call.1} parent=114 // pred_check_branch
          %1266 = sbr.rel (%p1264) target = $region135
        $region134: #{tpu_custom_call.1} parent=114 // pred_region
          %v1267 = vld [vmem:[#allocation2] sm:$0xff]
          %v1268 = vld [vmem:[%s6] sm:$0x1]
          %v1270 = vlaneseq
          %v1271 = vshrl.u32 %v1270, 7
          %v1272 = vsub.s32 0, %v1271
          %v1273 = vrot.slane %v1268, %v1272
          %v1275 = vadd.f32 %v1267, %v1273
          %1276 = vst [vmem:[%s659] sm:$0xff] %v1275
        $region135: #{tpu_custom_call.1} parent=114 // pred_fallthru
          _
        %s1277 = sand.u32 %s229, 1
        %s1278 = scalar_lea.sflag [#allocation8], %s1277
        %s1279 = sand.u32 %s229, 1
        %s1280 = smul.addr %s1279, 8
        %s1281 = scalar_lea.vmem [#allocation7], %s1280
        // Predicated region
        $region136: #{tpu_custom_call.1} parent=114 // pred_check
          %p1282 = pneg %p239
        $region137: #{tpu_custom_call.1} parent=114 // pred_check_branch
          %1284 = sbr.rel (%p1282) target = $region139
        $region138: #{tpu_custom_call.1} parent=114 // pred_region
          %s1286 = ssub.s32 128, 128
          %1287 = vsyncadd %s1278, %s1286
          %s1288 = smul.addr %s26, 2
          %s1289 = sadd.s32 %s27, %s1288
          %s1290 = smul.addr %s1289, 128
          %s1291 = scalar_lea.hbm %s7, %s1290
          %s1293 = sshll.u32 %s1281, 4
          %s1294 = int_to_ptr.vmem [resolvable:$true] %s1293
          %1296 = dma.vmem_to_hbm [thread:$0]  %s1294, 128, %s1291, %s1278
        $region139: #{tpu_custom_call.1} parent=114 // pred_fallthru
          _
      $region115: #{tpu_custom_call.1} parent=5 // pred_fallthru
        _
      %p1297 = scmp.le.s32.totalorder 2, %s16
      // Predicated region
      $region140: #{tpu_custom_call.1} parent=5 // pred_check
        %p1298 = pneg %p1297
      $region141: #{tpu_custom_call.1} parent=5 // pred_check_branch
        %1300 = sbr.rel (%p1298) target = $region143
      $region142: #{tpu_custom_call.1} parent=5 // pred_region
        %s1301 = ssub.s32 %s16, 2
        // Predicated region
        $region144: #{tpu_custom_call.1} parent=142 // pred_check
          %p1302 = pneg %p245
        $region145: #{tpu_custom_call.1} parent=142 // pred_check_branch
          %1304 = sbr.rel (%p1302) target = $region147
        $region146: #{tpu_custom_call.1} parent=142 // pred_region
          %s1305 = sand.u32 %s230, 1
          %s1306 = scalar_lea.sflag [#allocation8], %s1305
          %s1307 = sand.u32 %s230, 1
          %s1308 = smul.addr %s1307, 8
          %s1309 = scalar_lea.vmem [#allocation7], %s1308
          %1310 = dma.done %s1306, 128
        $region147: #{tpu_custom_call.1} parent=142 // pred_fallthru
          _
      $region143: #{tpu_custom_call.1} parent=5 // pred_fallthru
        _
    $region6: #{tpu_custom_call.1} parent=1 // loop_footer
      %s20 = sadd.s32 1, %s16
    $region7: #{tpu_custom_call.1} parent=1 // loop_footer_branch
      %15 = sbr.rel target = $region3
    $region8: #{tpu_custom_call.1} parent=1 // loop_exit
      _
    %1311 = vsyncpa [#allocation8], 1
    %s1312 = scalar_lea.sflag [#allocation8], 1
    %1313 = vsyncpa %s1312, 1

</llo_original>
